<compile_context>
chip_gen: v7x
topology: tpu7x:2x2x1
jax: 0.10.0
libtpu: 0.0.40
codegen_flags: <defaults>
</compile_context>

<pallas_src>
import functools

import jax
import jax.numpy as jnp
from jax.experimental import pallas as pl
from jax.experimental.pallas import tpu as pltpu

EPS = 1e-5  # nn.InstanceNorm2d default eps (affine=False, no running stats)


def _residual_block_kernel(x_ref, w1_ref, w2_ref, o_ref, xpf_ref, *, H, W):
    """Nb batch samples per grid step.

    x_ref  : (Nb, C, L) f32, L = H*(W+2); each row is already W-reflection
             padded (columns 0 and W+1 hold the reflected neighbours).
    w*_ref : (9, C, C) bf16, w[t, cout, cin] for tap t = ky*3 + kx.
    o_ref  : (Nb, C, L) f32 (pad columns contain don't-care values).
    xpf_ref: (C, (H+2)*(W+2) + 2) bf16 scratch (flat fully padded plane).
    """
    Nb = x_ref.shape[0]
    C = x_ref.shape[1]
    P = W + 2
    L = H * P
    HP2 = (H + 2) * P
    inv_hw = 1.0 / float(H * W)

    # Column-in-row index and masks, generated in-kernel (no pipelined input),
    # hoisted once per grid step and reused for every sample / conv.
    q = jax.lax.broadcasted_iota(jnp.int32, (1, L), 1) % P
    valid = jnp.logical_and(q >= 1, q <= W)      # real pixels
    is_lpad = q == 0
    is_rpad = q == (W + 1)

    # The two flat-plane "corner" lanes only ever feed pad-column outputs;
    # zero them once per grid step (hoisted out of the conv helper).
    xpf_ref[:, 0:1] = jnp.zeros((C, 1), jnp.bfloat16)
    xpf_ref[:, 1 + HP2:2 + HP2] = jnp.zeros((C, 1), jnp.bfloat16)

    def conv3x3_instnorm(src16, w_ref):
        # src16: (C, L) bf16 with correct W-reflection pad columns.
        # ---- reflection pad in H: three contiguous lane-slice stores.
        xpf_ref[:, 1:1 + P] = src16[:, P:2 * P]                       # top pad = row 1
        xpf_ref[:, 1 + P:1 + P + L] = src16                           # interior rows
        xpf_ref[:, 1 + (H + 1) * P:1 + HP2] = src16[:, (H - 2) * P:(H - 1) * P]

        # ---- 9 tap-accumulating MXU matmuls, f32 accumulation, no im2col.
        y = None
        for dy in range(3):
            for dx in range(3):
                t = dy * 3 + dx
                o = dy * P + dx
                part = jnp.dot(w_ref[t], xpf_ref[:, o:o + L],
                               preferred_element_type=jnp.float32)
                y = part if y is None else y + part

        # ---- fused one-pass InstanceNorm stats (pad columns masked out).
        y_m = jnp.where(valid, y, 0.0)
        mean = jnp.sum(y_m, axis=1, keepdims=True) * inv_hw           # (C, 1)
        ex2 = jnp.sum(y_m * y_m, axis=1, keepdims=True) * inv_hw      # (C, 1)
        var = jnp.maximum(ex2 - mean * mean, 0.0)                     # clamp: no NaN
        return (y - mean) * jax.lax.rsqrt(var + EPS)

    # Unrolled loop over the Nb samples of this grid step (amortizes per-step
    # overhead; Nb is a small static constant).
    for n in range(Nb):
        x = x_ref[n]                                                  # (C, L) f32

        # conv1 -> InstanceNorm -> ReLU
        h = conv3x3_instnorm(x.astype(jnp.bfloat16), w1_ref)
        h = jnp.maximum(h, 0.0)

        # Restore the W-reflection pad columns (conv1 left garbage there):
        # col 0 <- col 2, col W+1 <- col W-1 of the same row.
        # NOTE: pltpu.roll is not used here because Mosaic's rotate lowering
        # requires (8,128)-aligned shapes; (C, L) is generally unaligned.
        left_src = jnp.concatenate([h[:, 2:], h[:, :2]], axis=1)          # h[n+2]
        right_src = jnp.concatenate([h[:, L - 2:], h[:, :L - 2]], axis=1)  # h[n-2]
        h = jnp.where(is_lpad, left_src, jnp.where(is_rpad, right_src, h))

        # conv2 -> InstanceNorm (ReLU + pad-restore fused into the bf16 cast
        # feeding the xpf stores; h is never staged through a scratch ref).
        h = conv3x3_instnorm(h.astype(jnp.bfloat16), w2_ref)

        # residual add (f32, lane-dense store)
        o_ref[n] = x + h


def _vmem_capacity_bytes():
    try:
        info = pltpu.get_tpu_info()
        cap = getattr(info, "vmem_capacity_bytes", None)
        if cap:
            return int(cap)
    except Exception:
        pass
    return 64 << 20  # conservative fallback (v7x per-TensorCore VMEM)


def _largest_divisor_leq(n, cap):
    cap = max(1, min(n, cap))
    for d in range(cap, 0, -1):
        if n % d == 0:
            return d
    return 1


@jax.jit
def residual_block(x_nchw, w1, b1, w2, b2):
    """x_nchw: (N, C, H, W); w*: (3, 3, Cin, Cout) HWIO; b*: (Cout,).

    Conv biases are intentionally unused: in this module each conv is
    immediately followed by InstanceNorm2d(affine=False), which cancels the
    bias exactly.  (Do NOT reuse this elision if the norm is removed or made
    affine.)
    """
    del b1, b2
    N, C, H, W = x_nchw.shape
    P = W + 2
    L = H * P

    vmem_cap = _vmem_capacity_bytes()

    # ---- choose Nb (samples per grid step): amortize per-step overhead while
    # keeping the pipelined blocks within ~1/4 of VMEM and >=2 grid steps so
    # megacore "parallel" splitting still engages both TensorCores.
    per_sample_blk = C * L * 4                            # one f32 (C, L) block
    nb_vmem_cap = max(1, (vmem_cap // 4) // max(1, 4 * per_sample_blk))
    nb_cap = min(8, nb_vmem_cap, max(1, N // 2))
    Nb = _largest_divisor_leq(N, nb_cap)
    # TODO(synk): for v7x single-image inference (N == 1), split the spatial
    # dim across both TensorCores (grid=(N, 2) + partial-sum exchange for the
    # InstanceNorm stats) so neither core idles.

    # Reflection-pad W once in XLA and flatten (H, W+2) onto the lane axis.
    # TODO(synk): when chaining many ResidualBlocks, keep activations in this
    # padded (N, C, L) layout between blocks (and emit valid pad columns from
    # the kernel) to avoid one extra HBM round-trip per block for pad/slice.
    xw = jnp.pad(x_nchw.astype(jnp.float32),
                 ((0, 0), (0, 0), (0, 0), (1, 1)), mode="reflect").reshape(N, C, L)

    # (9, Cout, Cin) bf16 tap slabs; constant index_map keeps them resident.
    w1t = jnp.transpose(w1, (0, 1, 3, 2)).reshape(9, C, C).astype(jnp.bfloat16)
    w2t = jnp.transpose(w2, (0, 1, 3, 2)).reshape(9, C, C).astype(jnp.bfloat16)

    # ---- generation-aware VMEM budget with headroom for compiler temporaries
    # (y, y_m, h, shift/select copies, bf16 matmul staging).
    blk = Nb * C * L * 4
    wbytes = 9 * C * C * 2
    scratch = C * ((H + 2) * P + 2) * 2
    temps = 8 * C * L * 4 + 9 * C * L * 2 + (2 << 20)
    need = 4 * blk + 4 * wbytes + scratch + temps
    vmem_limit = int(min(max(need, 16 << 20), int(vmem_cap * 0.8)))

    kernel = functools.partial(_residual_block_kernel, H=H, W=W)

    out = pl.pallas_call(
        kernel,
        out_shape=jax.ShapeDtypeStruct((N, C, L), jnp.float32),
        grid_spec=pltpu.PrefetchScalarGridSpec(
            num_scalar_prefetch=0,
            grid=(N // Nb,),
            in_specs=[
                pl.BlockSpec((Nb, C, L), lambda g: (g, 0, 0)),
                pl.BlockSpec((9, C, C), lambda g: (0, 0, 0)),
                pl.BlockSpec((9, C, C), lambda g: (0, 0, 0)),
            ],
            out_specs=pl.BlockSpec((Nb, C, L), lambda g: (g, 0, 0)),
            scratch_shapes=[
                pltpu.VMEM((C, (H + 2) * P + 2), jnp.bfloat16),   # padded plane
            ],
        ),
        compiler_params=pltpu.CompilerParams(
            dimension_semantics=("parallel",),
            vmem_limit_bytes=vmem_limit,
        ),
    )(xw, w1t, w2t)

    # Drop the two pad columns of each row and restore (N, C, H, W).
    return out.reshape(N, C, H, P)[:, :, :, 1:W + 1]


# ----------------------------- pure-JAX reference -----------------------------
def _ref_forward(x_nchw, w1, b1, w2, b2):
    def conv(x, w, b):
        xp = jnp.pad(x, ((0, 0), (0, 0), (1, 1), (1, 1)), mode="reflect")
        w_oihw = jnp.transpose(w, (3, 2, 0, 1))  # (Cout, Cin, 3, 3)
        y = jax.lax.conv_general_dilated(
            xp, w_oihw, window_strides=(1, 1), padding="VALID",
            dimension_numbers=("NCHW", "OIHW", "NCHW"))
        return y + b[None, :, None, None]

    def inorm(x):
        mean = jnp.mean(x, axis=(2, 3), keepdims=True)
        var = jnp.mean((x - mean) ** 2, axis=(2, 3), keepdims=True)
        return (x - mean) * jax.lax.rsqrt(var + EPS)

    h = jnp.maximum(inorm(conv(x_nchw, w1, b1)), 0.0)
    h = inorm(conv(h, w2, b2))
    return x_nchw + h


if __name__ == "__main__":
    key = jax.random.PRNGKey(0)
    k_x, k_w1, k_b1, k_w2, k_b2 = jax.random.split(key, 5)

    N, C, H, W = 2, 4, 16, 16
    x = jax.random.normal(k_x, (N, C, H, W), dtype=jnp.float32)
    # deterministic synthetic parameters (Conv2d(in=C, out=C, k=3) x 2)
    w1 = 0.1 * jax.random.normal(k_w1, (3, 3, C, C), dtype=jnp.float32)
    b1 = 0.1 * jax.random.normal(k_b1, (C,), dtype=jnp.float32)
    w2 = 0.1 * jax.random.normal(k_w2, (3, 3, C, C), dtype=jnp.float32)
    b2 = 0.1 * jax.random.normal(k_b2, (C,), dtype=jnp.float32)

    out = jax.block_until_ready(residual_block(x, w1, b1, w2, b2))
    ref = jax.block_until_ready(_ref_forward(x, w1, b1, w2, b2))

    assert out.shape == (N, C, H, W)
    # Kernel feeds the MXU with bf16 inputs (f32 accumulate); reference is
    # pure f32, hence the relaxed tolerance.
    assert jnp.allclose(out, ref, atol=5e-2, rtol=5e-2), "mismatch vs reference"

    print("KERNEL_OK")
</pallas_src>

<mosaic_0001>
module attributes {stable_mosaic.version = 11 : i64} {
  func.func @_residual_block_kernel(%arg0: i32, %arg1: memref<1x4x288xf32, #tpu.memory_space<vmem>>, %arg2: memref<9x4x4xbf16, #tpu.memory_space<vmem>>, %arg3: memref<9x4x4xbf16, #tpu.memory_space<vmem>>, %arg4: memref<1x4x288xf32, #tpu.memory_space<vmem>>, %arg5: memref<4x326xbf16, #tpu.memory_space<vmem>>) attributes {dimension_semantics = [#tpu.dimension_semantics<parallel>], iteration_bounds = array<i64: 2>, scalar_prefetch = 0 : i64, scratch_operands = 1 : i64, tpu.core_type = #tpu.core_type<tc>, window_params = [{transform_indices = @transform_0, window_bounds = array<i64: 1, 4, 288>}, {pipeline_mode = #tpu.pipeline_mode<synchronous>, transform_indices = @transform_1, window_bounds = array<i64: 9, 4, 4>}, {pipeline_mode = #tpu.pipeline_mode<synchronous>, transform_indices = @transform_2, window_bounds = array<i64: 9, 4, 4>}, {transform_indices = @transform_3, window_bounds = array<i64: 1, 4, 288>}]} {
    %0 = tpu.iota {dimensions = array<i32: 1>} : vector<1x288xi32>
    %c18_i32 = arith.constant 18 : i32
    %c0_i32 = arith.constant 0 : i32
    %1 = arith.cmpi eq, %c18_i32, %c0_i32 : i32
    %c1_i32 = arith.constant 1 : i32
    %2 = arith.select %1, %c1_i32, %c18_i32 : i32
    %3 = vector.broadcast %2 : i32 to vector<1x288xi32>
    %4 = arith.remsi %0, %3 : vector<1x288xi32>
    %c0_i32_0 = arith.constant 0 : i32
    %5 = vector.broadcast %c0_i32_0 : i32 to vector<1x288xi32>
    %6 = arith.cmpi ne, %4, %5 : vector<1x288xi32>
    %c0_i32_1 = arith.constant 0 : i32
    %7 = vector.broadcast %c0_i32_1 : i32 to vector<1x288xi32>
    %8 = arith.cmpi slt, %4, %7 : vector<1x288xi32>
    %c0_i32_2 = arith.constant 0 : i32
    %9 = arith.cmpi slt, %2, %c0_i32_2 : i32
    %10 = vector.broadcast %9 : i1 to vector<1x288xi1>
    %11 = vector.broadcast %10 : vector<1x288xi1> to vector<1x288xi1>
    %12 = arith.xori %8, %11 : vector<1x288xi1>
    %13 = arith.andi %12, %6 : vector<1x288xi1>
    %14 = vector.broadcast %2 : i32 to vector<1x288xi32>
    %15 = arith.addi %4, %14 : vector<1x288xi32>
    %16 = arith.select %13, %15, %4 : vector<1x288xi1>, vector<1x288xi32>
    %c1_i32_3 = arith.constant 1 : i32
    %17 = vector.broadcast %c1_i32_3 : i32 to vector<1x288xi32>
    %18 = arith.cmpi sge, %16, %17 : vector<1x288xi32>
    %c16_i32 = arith.constant 16 : i32
    %19 = vector.broadcast %c16_i32 : i32 to vector<1x288xi32>
    %20 = arith.cmpi sle, %16, %19 : vector<1x288xi32>
    %21 = arith.andi %18, %20 : vector<1x288xi1>
    %c0_i32_4 = arith.constant 0 : i32
    %22 = vector.broadcast %c0_i32_4 : i32 to vector<1x288xi32>
    %23 = arith.cmpi eq, %16, %22 : vector<1x288xi32>
    %c17_i32 = arith.constant 17 : i32
    %24 = vector.broadcast %c17_i32 : i32 to vector<1x288xi32>
    %25 = arith.cmpi eq, %16, %24 : vector<1x288xi32>
    %cst = arith.constant 0.000000e+00 : bf16
    %26 = vector.broadcast %cst : bf16 to vector<4x1xbf16>
    %c0 = arith.constant 0 : index
    %c0_5 = arith.constant 0 : index
    %27 = vector.load %arg5[%c0, %c0_5] : memref<4x326xbf16, #tpu.memory_space<vmem>>, vector<4x1xbf16>
    tpu.vector_store %arg5[%c0, %c0_5], %26 {strides = array<i32>} : memref<4x326xbf16, #tpu.memory_space<vmem>>, vector<4x1xbf16>,
    %cst_6 = arith.constant 0.000000e+00 : bf16
    %28 = vector.broadcast %cst_6 : bf16 to vector<4x1xbf16>
    %c0_7 = arith.constant 0 : index
    %c325 = arith.constant 325 : index
    %29 = vector.load %arg5[%c0_7, %c325] : memref<4x326xbf16, #tpu.memory_space<vmem>>, vector<4x1xbf16>
    tpu.vector_store %arg5[%c0_7, %c325], %28 {strides = array<i32>} : memref<4x326xbf16, #tpu.memory_space<vmem>>, vector<4x1xbf16>,
    %c0_8 = arith.constant 0 : index
    %c0_9 = arith.constant 0 : index
    %c0_10 = arith.constant 0 : index
    %30 = vector.load %arg1[%c0_8, %c0_9, %c0_10] : memref<1x4x288xf32, #tpu.memory_space<vmem>>, vector<1x4x288xf32>
    %31 = vector.shape_cast %30 : vector<1x4x288xf32> to vector<4x288xf32>
    %32 = arith.truncf %31 : vector<4x288xf32> to vector<4x288xbf16>
    %33 = vector.extract_strided_slice %32 {offsets = [0, 18], sizes = [4, 18], strides = [1, 1]} : vector<4x288xbf16> to vector<4x18xbf16>
    %c0_11 = arith.constant 0 : index
    %c1 = arith.constant 1 : index
    %34 = vector.load %arg5[%c0_11, %c1] : memref<4x326xbf16, #tpu.memory_space<vmem>>, vector<4x18xbf16>
    tpu.vector_store %arg5[%c0_11, %c1], %33 {strides = array<i32>} : memref<4x326xbf16, #tpu.memory_space<vmem>>, vector<4x18xbf16>,
    %c0_12 = arith.constant 0 : index
    %c19 = arith.constant 19 : index
    %35 = vector.load %arg5[%c0_12, %c19] : memref<4x326xbf16, #tpu.memory_space<vmem>>, vector<4x288xbf16>
    tpu.vector_store %arg5[%c0_12, %c19], %32 {strides = array<i32>} : memref<4x326xbf16, #tpu.memory_space<vmem>>, vector<4x288xbf16>,
    %36 = vector.extract_strided_slice %32 {offsets = [0, 252], sizes = [4, 18], strides = [1, 1]} : vector<4x288xbf16> to vector<4x18xbf16>
    %c0_13 = arith.constant 0 : index
    %c307 = arith.constant 307 : index
    %37 = vector.load %arg5[%c0_13, %c307] : memref<4x326xbf16, #tpu.memory_space<vmem>>, vector<4x18xbf16>
    tpu.vector_store %arg5[%c0_13, %c307], %36 {strides = array<i32>} : memref<4x326xbf16, #tpu.memory_space<vmem>>, vector<4x18xbf16>,
    %c0_14 = arith.constant 0 : index
    %c0_15 = arith.constant 0 : index
    %c0_16 = arith.constant 0 : index
    %38 = vector.load %arg2[%c0_14, %c0_15, %c0_16] : memref<9x4x4xbf16, #tpu.memory_space<vmem>>, vector<1x4x4xbf16>
    %39 = vector.shape_cast %38 : vector<1x4x4xbf16> to vector<4x4xbf16>
    %c0_17 = arith.constant 0 : index
    %c0_18 = arith.constant 0 : index
    %40 = vector.load %arg5[%c0_17, %c0_18] : memref<4x326xbf16, #tpu.memory_space<vmem>>, vector<4x288xbf16>
    %cst_19 = arith.constant dense<0.000000e+00> : vector<4x288xf32>
    %41 = tpu.matmul %39, %40, %cst_19 {dimension_numbers = #tpu.dot_dimension_numbers<[1], [0], [0], [1], [0, 0, 1, 1], [], []>} : vector<4x4xbf16>, vector<4x288xbf16>, vector<4x288xf32> -> vector<4x288xf32>
    %c1_20 = arith.constant 1 : index
    %c0_21 = arith.constant 0 : index
    %c0_22 = arith.constant 0 : index
    %42 = vector.load %arg2[%c1_20, %c0_21, %c0_22] : memref<9x4x4xbf16, #tpu.memory_space<vmem>>, vector<1x4x4xbf16>
    %43 = vector.shape_cast %42 : vector<1x4x4xbf16> to vector<4x4xbf16>
    %c0_23 = arith.constant 0 : index
    %c1_24 = arith.constant 1 : index
    %44 = vector.load %arg5[%c0_23, %c1_24] : memref<4x326xbf16, #tpu.memory_space<vmem>>, vector<4x288xbf16>
    %cst_25 = arith.constant dense<0.000000e+00> : vector<4x288xf32>
    %45 = tpu.matmul %43, %44, %cst_25 {dimension_numbers = #tpu.dot_dimension_numbers<[1], [0], [0], [1], [0, 0, 1, 1], [], []>} : vector<4x4xbf16>, vector<4x288xbf16>, vector<4x288xf32> -> vector<4x288xf32>
    %46 = arith.addf %41, %45 : vector<4x288xf32>
    %c2 = arith.constant 2 : index
    %c0_26 = arith.constant 0 : index
    %c0_27 = arith.constant 0 : index
    %47 = vector.load %arg2[%c2, %c0_26, %c0_27] : memref<9x4x4xbf16, #tpu.memory_space<vmem>>, vector<1x4x4xbf16>
    %48 = vector.shape_cast %47 : vector<1x4x4xbf16> to vector<4x4xbf16>
    %c0_28 = arith.constant 0 : index
    %c2_29 = arith.constant 2 : index
    %49 = vector.load %arg5[%c0_28, %c2_29] : memref<4x326xbf16, #tpu.memory_space<vmem>>, vector<4x288xbf16>
    %cst_30 = arith.constant dense<0.000000e+00> : vector<4x288xf32>
    %50 = tpu.matmul %48, %49, %cst_30 {dimension_numbers = #tpu.dot_dimension_numbers<[1], [0], [0], [1], [0, 0, 1, 1], [], []>} : vector<4x4xbf16>, vector<4x288xbf16>, vector<4x288xf32> -> vector<4x288xf32>
    %51 = arith.addf %46, %50 : vector<4x288xf32>
    %c3 = arith.constant 3 : index
    %c0_31 = arith.constant 0 : index
    %c0_32 = arith.constant 0 : index
    %52 = vector.load %arg2[%c3, %c0_31, %c0_32] : memref<9x4x4xbf16, #tpu.memory_space<vmem>>, vector<1x4x4xbf16>
    %53 = vector.shape_cast %52 : vector<1x4x4xbf16> to vector<4x4xbf16>
    %c0_33 = arith.constant 0 : index
    %c18 = arith.constant 18 : index
    %54 = vector.load %arg5[%c0_33, %c18] : memref<4x326xbf16, #tpu.memory_space<vmem>>, vector<4x288xbf16>
    %cst_34 = arith.constant dense<0.000000e+00> : vector<4x288xf32>
    %55 = tpu.matmul %53, %54, %cst_34 {dimension_numbers = #tpu.dot_dimension_numbers<[1], [0], [0], [1], [0, 0, 1, 1], [], []>} : vector<4x4xbf16>, vector<4x288xbf16>, vector<4x288xf32> -> vector<4x288xf32>
    %56 = arith.addf %51, %55 : vector<4x288xf32>
    %c4 = arith.constant 4 : index
    %c0_35 = arith.constant 0 : index
    %c0_36 = arith.constant 0 : index
    %57 = vector.load %arg2[%c4, %c0_35, %c0_36] : memref<9x4x4xbf16, #tpu.memory_space<vmem>>, vector<1x4x4xbf16>
    %58 = vector.shape_cast %57 : vector<1x4x4xbf16> to vector<4x4xbf16>
    %c0_37 = arith.constant 0 : index
    %c19_38 = arith.constant 19 : index
    %59 = vector.load %arg5[%c0_37, %c19_38] : memref<4x326xbf16, #tpu.memory_space<vmem>>, vector<4x288xbf16>
    %cst_39 = arith.constant dense<0.000000e+00> : vector<4x288xf32>
    %60 = tpu.matmul %58, %59, %cst_39 {dimension_numbers = #tpu.dot_dimension_numbers<[1], [0], [0], [1], [0, 0, 1, 1], [], []>} : vector<4x4xbf16>, vector<4x288xbf16>, vector<4x288xf32> -> vector<4x288xf32>
    %61 = arith.addf %56, %60 : vector<4x288xf32>
    %c5 = arith.constant 5 : index
    %c0_40 = arith.constant 0 : index
    %c0_41 = arith.constant 0 : index
    %62 = vector.load %arg2[%c5, %c0_40, %c0_41] : memref<9x4x4xbf16, #tpu.memory_space<vmem>>, vector<1x4x4xbf16>
    %63 = vector.shape_cast %62 : vector<1x4x4xbf16> to vector<4x4xbf16>
    %c0_42 = arith.constant 0 : index
    %c20 = arith.constant 20 : index
    %64 = vector.load %arg5[%c0_42, %c20] : memref<4x326xbf16, #tpu.memory_space<vmem>>, vector<4x288xbf16>
    %cst_43 = arith.constant dense<0.000000e+00> : vector<4x288xf32>
    %65 = tpu.matmul %63, %64, %cst_43 {dimension_numbers = #tpu.dot_dimension_numbers<[1], [0], [0], [1], [0, 0, 1, 1], [], []>} : vector<4x4xbf16>, vector<4x288xbf16>, vector<4x288xf32> -> vector<4x288xf32>
    %66 = arith.addf %61, %65 : vector<4x288xf32>
    %c6 = arith.constant 6 : index
    %c0_44 = arith.constant 0 : index
    %c0_45 = arith.constant 0 : index
    %67 = vector.load %arg2[%c6, %c0_44, %c0_45] : memref<9x4x4xbf16, #tpu.memory_space<vmem>>, vector<1x4x4xbf16>
    %68 = vector.shape_cast %67 : vector<1x4x4xbf16> to vector<4x4xbf16>
    %c0_46 = arith.constant 0 : index
    %c36 = arith.constant 36 : index
    %69 = vector.load %arg5[%c0_46, %c36] : memref<4x326xbf16, #tpu.memory_space<vmem>>, vector<4x288xbf16>
    %cst_47 = arith.constant dense<0.000000e+00> : vector<4x288xf32>
    %70 = tpu.matmul %68, %69, %cst_47 {dimension_numbers = #tpu.dot_dimension_numbers<[1], [0], [0], [1], [0, 0, 1, 1], [], []>} : vector<4x4xbf16>, vector<4x288xbf16>, vector<4x288xf32> -> vector<4x288xf32>
    %71 = arith.addf %66, %70 : vector<4x288xf32>
    %c7 = arith.constant 7 : index
    %c0_48 = arith.constant 0 : index
    %c0_49 = arith.constant 0 : index
    %72 = vector.load %arg2[%c7, %c0_48, %c0_49] : memref<9x4x4xbf16, #tpu.memory_space<vmem>>, vector<1x4x4xbf16>
    %73 = vector.shape_cast %72 : vector<1x4x4xbf16> to vector<4x4xbf16>
    %c0_50 = arith.constant 0 : index
    %c37 = arith.constant 37 : index
    %74 = vector.load %arg5[%c0_50, %c37] : memref<4x326xbf16, #tpu.memory_space<vmem>>, vector<4x288xbf16>
    %cst_51 = arith.constant dense<0.000000e+00> : vector<4x288xf32>
    %75 = tpu.matmul %73, %74, %cst_51 {dimension_numbers = #tpu.dot_dimension_numbers<[1], [0], [0], [1], [0, 0, 1, 1], [], []>} : vector<4x4xbf16>, vector<4x288xbf16>, vector<4x288xf32> -> vector<4x288xf32>
    %76 = arith.addf %71, %75 : vector<4x288xf32>
    %c8 = arith.constant 8 : index
    %c0_52 = arith.constant 0 : index
    %c0_53 = arith.constant 0 : index
    %77 = vector.load %arg2[%c8, %c0_52, %c0_53] : memref<9x4x4xbf16, #tpu.memory_space<vmem>>, vector<1x4x4xbf16>
    %78 = vector.shape_cast %77 : vector<1x4x4xbf16> to vector<4x4xbf16>
    %c0_54 = arith.constant 0 : index
    %c38 = arith.constant 38 : index
    %79 = vector.load %arg5[%c0_54, %c38] : memref<4x326xbf16, #tpu.memory_space<vmem>>, vector<4x288xbf16>
    %cst_55 = arith.constant dense<0.000000e+00> : vector<4x288xf32>
    %80 = tpu.matmul %78, %79, %cst_55 {dimension_numbers = #tpu.dot_dimension_numbers<[1], [0], [0], [1], [0, 0, 1, 1], [], []>} : vector<4x4xbf16>, vector<4x288xbf16>, vector<4x288xf32> -> vector<4x288xf32>
    %81 = arith.addf %76, %80 : vector<4x288xf32>
    %cst_56 = arith.constant 0.000000e+00 : f32
    %82 = vector.shape_cast %21 : vector<1x288xi1> to vector<1x288xi1>
    %83 = vector.broadcast %82 : vector<1x288xi1> to vector<4x288xi1>
    %84 = vector.broadcast %cst_56 : f32 to vector<4x288xf32>
    %85 = arith.select %83, %81, %84 : vector<4x288xi1>, vector<4x288xf32>
    %cst_57 = arith.constant dense<0.000000e+00> : vector<4xf32>
    %86 = vector.multi_reduction <add>, %85, %cst_57 [1] : vector<4x288xf32> to vector<4xf32>
    %87 = vector.shape_cast %86 : vector<4xf32> to vector<4x1xf32>
    %cst_58 = arith.constant 3.906250e-03 : f32
    %88 = vector.broadcast %cst_58 : f32 to vector<4x1xf32>
    %89 = arith.mulf %87, %88 : vector<4x1xf32>
    %90 = arith.mulf %85, %85 : vector<4x288xf32>
    %cst_59 = arith.constant dense<0.000000e+00> : vector<4xf32>
    %91 = vector.multi_reduction <add>, %90, %cst_59 [1] : vector<4x288xf32> to vector<4xf32>
    %92 = vector.shape_cast %91 : vector<4xf32> to vector<4x1xf32>
    %cst_60 = arith.constant 3.906250e-03 : f32
    %93 = vector.broadcast %cst_60 : f32 to vector<4x1xf32>
    %94 = arith.mulf %92, %93 : vector<4x1xf32>
    %95 = arith.mulf %89, %89 : vector<4x1xf32>
    %96 = arith.subf %94, %95 : vector<4x1xf32>
    %cst_61 = arith.constant 0.000000e+00 : f32
    %97 = vector.broadcast %cst_61 : f32 to vector<4x1xf32>
    %98 = arith.maximumf %96, %97 : vector<4x1xf32>
    %99 = vector.broadcast %89 : vector<4x1xf32> to vector<4x288xf32>
    %100 = arith.subf %81, %99 : vector<4x288xf32>
    %cst_62 = arith.constant 9.99999974E-6 : f32
    %101 = vector.broadcast %cst_62 : f32 to vector<4x1xf32>
    %102 = arith.addf %98, %101 : vector<4x1xf32>
    %103 = math.rsqrt %102 : vector<4x1xf32>
    %104 = vector.broadcast %103 : vector<4x1xf32> to vector<4x288xf32>
    %105 = arith.mulf %100, %104 : vector<4x288xf32>
    %cst_63 = arith.constant 0.000000e+00 : f32
    %106 = vector.broadcast %cst_63 : f32 to vector<4x288xf32>
    %107 = arith.maximumf %105, %106 : vector<4x288xf32>
    %108 = vector.extract_strided_slice %107 {offsets = [0, 2], sizes = [4, 286], strides = [1, 1]} : vector<4x288xf32> to vector<4x286xf32>
    %109 = vector.extract_strided_slice %107 {offsets = [0, 0], sizes = [4, 2], strides = [1, 1]} : vector<4x288xf32> to vector<4x2xf32>
    %110 = tpu.concatenate %108, %109 in 1 : vector<4x286xf32>, vector<4x2xf32> -> vector<4x288xf32>
    %111 = vector.extract_strided_slice %107 {offsets = [0, 286], sizes = [4, 2], strides = [1, 1]} : vector<4x288xf32> to vector<4x2xf32>
    %112 = vector.extract_strided_slice %107 {offsets = [0, 0], sizes = [4, 286], strides = [1, 1]} : vector<4x288xf32> to vector<4x286xf32>
    %113 = tpu.concatenate %111, %112 in 1 : vector<4x2xf32>, vector<4x286xf32> -> vector<4x288xf32>
    %114 = vector.shape_cast %25 : vector<1x288xi1> to vector<1x288xi1>
    %115 = vector.broadcast %114 : vector<1x288xi1> to vector<4x288xi1>
    %116 = arith.select %115, %113, %107 : vector<4x288xi1>, vector<4x288xf32>
    %117 = vector.shape_cast %23 : vector<1x288xi1> to vector<1x288xi1>
    %118 = vector.broadcast %117 : vector<1x288xi1> to vector<4x288xi1>
    %119 = arith.select %118, %110, %116 : vector<4x288xi1>, vector<4x288xf32>
    %120 = arith.truncf %119 : vector<4x288xf32> to vector<4x288xbf16>
    %121 = vector.extract_strided_slice %120 {offsets = [0, 18], sizes = [4, 18], strides = [1, 1]} : vector<4x288xbf16> to vector<4x18xbf16>
    %c0_64 = arith.constant 0 : index
    %c1_65 = arith.constant 1 : index
    %122 = vector.load %arg5[%c0_64, %c1_65] : memref<4x326xbf16, #tpu.memory_space<vmem>>, vector<4x18xbf16>
    tpu.vector_store %arg5[%c0_64, %c1_65], %121 {strides = array<i32>} : memref<4x326xbf16, #tpu.memory_space<vmem>>, vector<4x18xbf16>,
    %c0_66 = arith.constant 0 : index
    %c19_67 = arith.constant 19 : index
    %123 = vector.load %arg5[%c0_66, %c19_67] : memref<4x326xbf16, #tpu.memory_space<vmem>>, vector<4x288xbf16>
    tpu.vector_store %arg5[%c0_66, %c19_67], %120 {strides = array<i32>} : memref<4x326xbf16, #tpu.memory_space<vmem>>, vector<4x288xbf16>,
    %124 = vector.extract_strided_slice %120 {offsets = [0, 252], sizes = [4, 18], strides = [1, 1]} : vector<4x288xbf16> to vector<4x18xbf16>
    %c0_68 = arith.constant 0 : index
    %c307_69 = arith.constant 307 : index
    %125 = vector.load %arg5[%c0_68, %c307_69] : memref<4x326xbf16, #tpu.memory_space<vmem>>, vector<4x18xbf16>
    tpu.vector_store %arg5[%c0_68, %c307_69], %124 {strides = array<i32>} : memref<4x326xbf16, #tpu.memory_space<vmem>>, vector<4x18xbf16>,
    %c0_70 = arith.constant 0 : index
    %c0_71 = arith.constant 0 : index
    %c0_72 = arith.constant 0 : index
    %126 = vector.load %arg3[%c0_70, %c0_71, %c0_72] : memref<9x4x4xbf16, #tpu.memory_space<vmem>>, vector<1x4x4xbf16>
    %127 = vector.shape_cast %126 : vector<1x4x4xbf16> to vector<4x4xbf16>
    %c0_73 = arith.constant 0 : index
    %c0_74 = arith.constant 0 : index
    %128 = vector.load %arg5[%c0_73, %c0_74] : memref<4x326xbf16, #tpu.memory_space<vmem>>, vector<4x288xbf16>
    %cst_75 = arith.constant dense<0.000000e+00> : vector<4x288xf32>
    %129 = tpu.matmul %127, %128, %cst_75 {dimension_numbers = #tpu.dot_dimension_numbers<[1], [0], [0], [1], [0, 0, 1, 1], [], []>} : vector<4x4xbf16>, vector<4x288xbf16>, vector<4x288xf32> -> vector<4x288xf32>
    %c1_76 = arith.constant 1 : index
    %c0_77 = arith.constant 0 : index
    %c0_78 = arith.constant 0 : index
    %130 = vector.load %arg3[%c1_76, %c0_77, %c0_78] : memref<9x4x4xbf16, #tpu.memory_space<vmem>>, vector<1x4x4xbf16>
    %131 = vector.shape_cast %130 : vector<1x4x4xbf16> to vector<4x4xbf16>
    %c0_79 = arith.constant 0 : index
    %c1_80 = arith.constant 1 : index
    %132 = vector.load %arg5[%c0_79, %c1_80] : memref<4x326xbf16, #tpu.memory_space<vmem>>, vector<4x288xbf16>
    %cst_81 = arith.constant dense<0.000000e+00> : vector<4x288xf32>
    %133 = tpu.matmul %131, %132, %cst_81 {dimension_numbers = #tpu.dot_dimension_numbers<[1], [0], [0], [1], [0, 0, 1, 1], [], []>} : vector<4x4xbf16>, vector<4x288xbf16>, vector<4x288xf32> -> vector<4x288xf32>
    %134 = arith.addf %129, %133 : vector<4x288xf32>
    %c2_82 = arith.constant 2 : index
    %c0_83 = arith.constant 0 : index
    %c0_84 = arith.constant 0 : index
    %135 = vector.load %arg3[%c2_82, %c0_83, %c0_84] : memref<9x4x4xbf16, #tpu.memory_space<vmem>>, vector<1x4x4xbf16>
    %136 = vector.shape_cast %135 : vector<1x4x4xbf16> to vector<4x4xbf16>
    %c0_85 = arith.constant 0 : index
    %c2_86 = arith.constant 2 : index
    %137 = vector.load %arg5[%c0_85, %c2_86] : memref<4x326xbf16, #tpu.memory_space<vmem>>, vector<4x288xbf16>
    %cst_87 = arith.constant dense<0.000000e+00> : vector<4x288xf32>
    %138 = tpu.matmul %136, %137, %cst_87 {dimension_numbers = #tpu.dot_dimension_numbers<[1], [0], [0], [1], [0, 0, 1, 1], [], []>} : vector<4x4xbf16>, vector<4x288xbf16>, vector<4x288xf32> -> vector<4x288xf32>
    %139 = arith.addf %134, %138 : vector<4x288xf32>
    %c3_88 = arith.constant 3 : index
    %c0_89 = arith.constant 0 : index
    %c0_90 = arith.constant 0 : index
    %140 = vector.load %arg3[%c3_88, %c0_89, %c0_90] : memref<9x4x4xbf16, #tpu.memory_space<vmem>>, vector<1x4x4xbf16>
    %141 = vector.shape_cast %140 : vector<1x4x4xbf16> to vector<4x4xbf16>
    %c0_91 = arith.constant 0 : index
    %c18_92 = arith.constant 18 : index
    %142 = vector.load %arg5[%c0_91, %c18_92] : memref<4x326xbf16, #tpu.memory_space<vmem>>, vector<4x288xbf16>
    %cst_93 = arith.constant dense<0.000000e+00> : vector<4x288xf32>
    %143 = tpu.matmul %141, %142, %cst_93 {dimension_numbers = #tpu.dot_dimension_numbers<[1], [0], [0], [1], [0, 0, 1, 1], [], []>} : vector<4x4xbf16>, vector<4x288xbf16>, vector<4x288xf32> -> vector<4x288xf32>
    %144 = arith.addf %139, %143 : vector<4x288xf32>
    %c4_94 = arith.constant 4 : index
    %c0_95 = arith.constant 0 : index
    %c0_96 = arith.constant 0 : index
    %145 = vector.load %arg3[%c4_94, %c0_95, %c0_96] : memref<9x4x4xbf16, #tpu.memory_space<vmem>>, vector<1x4x4xbf16>
    %146 = vector.shape_cast %145 : vector<1x4x4xbf16> to vector<4x4xbf16>
    %c0_97 = arith.constant 0 : index
    %c19_98 = arith.constant 19 : index
    %147 = vector.load %arg5[%c0_97, %c19_98] : memref<4x326xbf16, #tpu.memory_space<vmem>>, vector<4x288xbf16>
    %cst_99 = arith.constant dense<0.000000e+00> : vector<4x288xf32>
    %148 = tpu.matmul %146, %147, %cst_99 {dimension_numbers = #tpu.dot_dimension_numbers<[1], [0], [0], [1], [0, 0, 1, 1], [], []>} : vector<4x4xbf16>, vector<4x288xbf16>, vector<4x288xf32> -> vector<4x288xf32>
    %149 = arith.addf %144, %148 : vector<4x288xf32>
    %c5_100 = arith.constant 5 : index
    %c0_101 = arith.constant 0 : index
    %c0_102 = arith.constant 0 : index
    %150 = vector.load %arg3[%c5_100, %c0_101, %c0_102] : memref<9x4x4xbf16, #tpu.memory_space<vmem>>, vector<1x4x4xbf16>
    %151 = vector.shape_cast %150 : vector<1x4x4xbf16> to vector<4x4xbf16>
    %c0_103 = arith.constant 0 : index
    %c20_104 = arith.constant 20 : index
    %152 = vector.load %arg5[%c0_103, %c20_104] : memref<4x326xbf16, #tpu.memory_space<vmem>>, vector<4x288xbf16>
    %cst_105 = arith.constant dense<0.000000e+00> : vector<4x288xf32>
    %153 = tpu.matmul %151, %152, %cst_105 {dimension_numbers = #tpu.dot_dimension_numbers<[1], [0], [0], [1], [0, 0, 1, 1], [], []>} : vector<4x4xbf16>, vector<4x288xbf16>, vector<4x288xf32> -> vector<4x288xf32>
    %154 = arith.addf %149, %153 : vector<4x288xf32>
    %c6_106 = arith.constant 6 : index
    %c0_107 = arith.constant 0 : index
    %c0_108 = arith.constant 0 : index
    %155 = vector.load %arg3[%c6_106, %c0_107, %c0_108] : memref<9x4x4xbf16, #tpu.memory_space<vmem>>, vector<1x4x4xbf16>
    %156 = vector.shape_cast %155 : vector<1x4x4xbf16> to vector<4x4xbf16>
    %c0_109 = arith.constant 0 : index
    %c36_110 = arith.constant 36 : index
    %157 = vector.load %arg5[%c0_109, %c36_110] : memref<4x326xbf16, #tpu.memory_space<vmem>>, vector<4x288xbf16>
    %cst_111 = arith.constant dense<0.000000e+00> : vector<4x288xf32>
    %158 = tpu.matmul %156, %157, %cst_111 {dimension_numbers = #tpu.dot_dimension_numbers<[1], [0], [0], [1], [0, 0, 1, 1], [], []>} : vector<4x4xbf16>, vector<4x288xbf16>, vector<4x288xf32> -> vector<4x288xf32>
    %159 = arith.addf %154, %158 : vector<4x288xf32>
    %c7_112 = arith.constant 7 : index
    %c0_113 = arith.constant 0 : index
    %c0_114 = arith.constant 0 : index
    %160 = vector.load %arg3[%c7_112, %c0_113, %c0_114] : memref<9x4x4xbf16, #tpu.memory_space<vmem>>, vector<1x4x4xbf16>
    %161 = vector.shape_cast %160 : vector<1x4x4xbf16> to vector<4x4xbf16>
    %c0_115 = arith.constant 0 : index
    %c37_116 = arith.constant 37 : index
    %162 = vector.load %arg5[%c0_115, %c37_116] : memref<4x326xbf16, #tpu.memory_space<vmem>>, vector<4x288xbf16>
    %cst_117 = arith.constant dense<0.000000e+00> : vector<4x288xf32>
    %163 = tpu.matmul %161, %162, %cst_117 {dimension_numbers = #tpu.dot_dimension_numbers<[1], [0], [0], [1], [0, 0, 1, 1], [], []>} : vector<4x4xbf16>, vector<4x288xbf16>, vector<4x288xf32> -> vector<4x288xf32>
    %164 = arith.addf %159, %163 : vector<4x288xf32>
    %c8_118 = arith.constant 8 : index
    %c0_119 = arith.constant 0 : index
    %c0_120 = arith.constant 0 : index
    %165 = vector.load %arg3[%c8_118, %c0_119, %c0_120] : memref<9x4x4xbf16, #tpu.memory_space<vmem>>, vector<1x4x4xbf16>
    %166 = vector.shape_cast %165 : vector<1x4x4xbf16> to vector<4x4xbf16>
    %c0_121 = arith.constant 0 : index
    %c38_122 = arith.constant 38 : index
    %167 = vector.load %arg5[%c0_121, %c38_122] : memref<4x326xbf16, #tpu.memory_space<vmem>>, vector<4x288xbf16>
    %cst_123 = arith.constant dense<0.000000e+00> : vector<4x288xf32>
    %168 = tpu.matmul %166, %167, %cst_123 {dimension_numbers = #tpu.dot_dimension_numbers<[1], [0], [0], [1], [0, 0, 1, 1], [], []>} : vector<4x4xbf16>, vector<4x288xbf16>, vector<4x288xf32> -> vector<4x288xf32>
    %169 = arith.addf %164, %168 : vector<4x288xf32>
    %cst_124 = arith.constant 0.000000e+00 : f32
    %170 = vector.shape_cast %21 : vector<1x288xi1> to vector<1x288xi1>
    %171 = vector.broadcast %170 : vector<1x288xi1> to vector<4x288xi1>
    %172 = vector.broadcast %cst_124 : f32 to vector<4x288xf32>
    %173 = arith.select %171, %169, %172 : vector<4x288xi1>, vector<4x288xf32>
    %cst_125 = arith.constant dense<0.000000e+00> : vector<4xf32>
    %174 = vector.multi_reduction <add>, %173, %cst_125 [1] : vector<4x288xf32> to vector<4xf32>
    %175 = vector.shape_cast %174 : vector<4xf32> to vector<4x1xf32>
    %cst_126 = arith.constant 3.906250e-03 : f32
    %176 = vector.broadcast %cst_126 : f32 to vector<4x1xf32>
    %177 = arith.mulf %175, %176 : vector<4x1xf32>
    %178 = arith.mulf %173, %173 : vector<4x288xf32>
    %cst_127 = arith.constant dense<0.000000e+00> : vector<4xf32>
    %179 = vector.multi_reduction <add>, %178, %cst_127 [1] : vector<4x288xf32> to vector<4xf32>
    %180 = vector.shape_cast %179 : vector<4xf32> to vector<4x1xf32>
    %cst_128 = arith.constant 3.906250e-03 : f32
    %181 = vector.broadcast %cst_128 : f32 to vector<4x1xf32>
    %182 = arith.mulf %180, %181 : vector<4x1xf32>
    %183 = arith.mulf %177, %177 : vector<4x1xf32>
    %184 = arith.subf %182, %183 : vector<4x1xf32>
    %cst_129 = arith.constant 0.000000e+00 : f32
    %185 = vector.broadcast %cst_129 : f32 to vector<4x1xf32>
    %186 = arith.maximumf %184, %185 : vector<4x1xf32>
    %187 = vector.broadcast %177 : vector<4x1xf32> to vector<4x288xf32>
    %188 = arith.subf %169, %187 : vector<4x288xf32>
    %cst_130 = arith.constant 9.99999974E-6 : f32
    %189 = vector.broadcast %cst_130 : f32 to vector<4x1xf32>
    %190 = arith.addf %186, %189 : vector<4x1xf32>
    %191 = math.rsqrt %190 : vector<4x1xf32>
    %192 = vector.broadcast %191 : vector<4x1xf32> to vector<4x288xf32>
    %193 = arith.mulf %188, %192 : vector<4x288xf32>
    %194 = arith.addf %31, %193 : vector<4x288xf32>
    %c0_131 = arith.constant 0 : index
    %c0_132 = arith.constant 0 : index
    %c0_133 = arith.constant 0 : index
    %195 = vector.load %arg4[%c0_131, %c0_132, %c0_133] : memref<1x4x288xf32, #tpu.memory_space<vmem>>, vector<1x4x288xf32>
    %196 = vector.shape_cast %195 : vector<1x4x288xf32> to vector<4x288xf32>
    %197 = vector.shape_cast %194 : vector<4x288xf32> to vector<1x4x288xf32>
    tpu.vector_store %arg4[%c0_131, %c0_132, %c0_133], %197 {strides = array<i32>} : memref<1x4x288xf32, #tpu.memory_space<vmem>>, vector<1x4x288xf32>,
    return
  }
  func.func @transform_0(%arg0: i32) -> (i32, i32, i32) {
    %c0_i32 = arith.constant 0 : i32
    %c0_i32_0 = arith.constant 0 : i32
    %c0_i32_1 = arith.constant 0 : i32
    return %arg0, %c0_i32, %c0_i32_0 : i32, i32, i32
  }
  func.func @transform_1(%arg0: i32) -> (i32, i32, i32) {
    %c0_i32 = arith.constant 0 : i32
    %c0_i32_0 = arith.constant 0 : i32
    %c0_i32_1 = arith.constant 0 : i32
    %c0_i32_2 = arith.constant 0 : i32
    return %c0_i32, %c0_i32_0, %c0_i32_1 : i32, i32, i32
  }
  func.func @transform_2(%arg0: i32) -> (i32, i32, i32) {
    %c0_i32 = arith.constant 0 : i32
    %c0_i32_0 = arith.constant 0 : i32
    %c0_i32_1 = arith.constant 0 : i32
    %c0_i32_2 = arith.constant 0 : i32
    return %c0_i32, %c0_i32_0, %c0_i32_1 : i32, i32, i32
  }
  func.func @transform_3(%arg0: i32) -> (i32, i32, i32) {
    %c0_i32 = arith.constant 0 : i32
    %c0_i32_0 = arith.constant 0 : i32
    %c0_i32_1 = arith.constant 0 : i32
    return %arg0, %c0_i32, %c0_i32_0 : i32, i32, i32
  }
}

</mosaic_0001>

<llo_original>
// kernel: residual_block.1
$region0: #{residual_block.1}
  #allocation0 [shape = 'u32[]', space=smem, size = 0x4, offset = 0x4, fixed_abs, tag = 'smem constant byte address 0x4 - core index']
  #allocation1 [shape = 'u32[144,128]{1,0:T(1,128)}', space=vmem, size = 0x12000, scoped, tag = 'internal scratch']
  #allocation2 [shape = 'bf16[4,326]{1,0:T(4,128)(2,1)}', space=vmem, size = 0xc00, scoped, tag = 'scratch operand']
  %s0 = inlined_call_operand.vmem [shape: f32[2,4,288], index: 0, kind: input, shape index: {}]
  %s1 = inlined_call_operand.vmem [shape: bf16[9,4,4], index: 1, kind: input, shape index: {}]
  %s2 = inlined_call_operand.vmem [shape: bf16[9,4,4], index: 2, kind: input, shape index: {}]
  %s3 = inlined_call_operand.vmem [shape: f32[2,4,288], index: 3, kind: output, shape index: {}]
  %s4 = sld [smem:[#allocation0]]
  $region45: #{residual_block.1} parent=0
    _
  %s6 = ssub.s32 1, %s4
  %s7 = scalar_select 0, %s6, %s4
  loop: start=0, step=1, limit=4
  $region2: #{residual_block.1} parent=0 // loop_pre_header
    _
  $region3: #{residual_block.1} parent=0 // loop_header
    %s9 = sphi 0, %s13
    %p10 = scmp.ge.s32.totalorder %s9, 4
    %s19 = sphi 0, %s21
    %s22 = sphi 0, %s19
    %s23 = sphi 0, %s22
    %s39 = sphi 0, %s23
    %s43 = sphi 0, %s43
    %s45 = sphi 0, %s43
    %s46 = sphi 0, %s45
    %s60 = sphi 0, %s46
    %s64 = sphi 0, %s64
    %s66 = sphi 0, %s64
    %s67 = sphi 0, %s66
    %s81 = sphi 0, %s67
    %s87 = sphi 0, %s89
    %s90 = sphi 0, %s87
    %s91 = sphi 0, %s90
    %s107 = sphi 0, %s91
  $region4: #{residual_block.1} parent=0 // loop_header_branch
    %12 = sbr.rel (%p10) target = $region8
  $region5: #{residual_block.1} parent=0 // loop_body
    %s14 = ssub.s32 %s9, 1
    %s15 = ssub.s32 %s9, 2
    %s16 = sadd.s32 %s9, 1
    %s17 = ssub.s32 %s9, %s16
    %p18 = scmp.eq.s32.totalorder %s17, 0
    %s20 = sadd.s32 %s19, 1
    %s21 = scalar_select %p18, %s19, %s20
    %p24 = pneg %p18
    %p25 = scmp.eq.s32.totalorder %s9, 1
    %p26 = por %p24, %p25
    %p27 = scmp.ne.s32.totalorder %s19, %s22
    %p28 = scmp.eq.s32.totalorder %s9, 0
    %p29 = por %p27, %p28
    %p30 = scmp.ne.s32.totalorder %s19, %s22
    %p31 = scmp.eq.s32.totalorder %s14, 1
    %p32 = por %p30, %p31
    %p33 = scmp.ne.s32.totalorder %s22, %s23
    %p34 = scmp.eq.s32.totalorder %s14, 0
    %p35 = por %p33, %p34
    %p36 = scmp.ne.s32.totalorder %s22, %s23
    %p37 = scmp.eq.s32.totalorder %s15, 1
    %p38 = por %p36, %p37
    %p40 = scmp.ne.s32.totalorder %s23, %s39
    %p41 = scmp.eq.s32.totalorder %s15, 0
    %p42 = por %p40, %p41
    %s44 = sadd.s32 %s43, 1
    %p47 = scmp.eq.s32.totalorder %s9, 1
    %p48 = scmp.ne.s32.totalorder %s43, %s45
    %p49 = scmp.eq.s32.totalorder %s9, 0
    %p50 = por %p48, %p49
    %p51 = scmp.ne.s32.totalorder %s43, %s45
    %p52 = scmp.eq.s32.totalorder %s14, 1
    %p53 = por %p51, %p52
    %p54 = scmp.ne.s32.totalorder %s45, %s46
    %p55 = scmp.eq.s32.totalorder %s14, 0
    %p56 = por %p54, %p55
    %p57 = scmp.ne.s32.totalorder %s45, %s46
    %p58 = scmp.eq.s32.totalorder %s15, 1
    %p59 = por %p57, %p58
    %p61 = scmp.ne.s32.totalorder %s46, %s60
    %p62 = scmp.eq.s32.totalorder %s15, 0
    %p63 = por %p61, %p62
    %s65 = sadd.s32 %s64, 1
    %p68 = scmp.eq.s32.totalorder %s9, 1
    %p69 = scmp.ne.s32.totalorder %s64, %s66
    %p70 = scmp.eq.s32.totalorder %s9, 0
    %p71 = por %p69, %p70
    %p72 = scmp.ne.s32.totalorder %s64, %s66
    %p73 = scmp.eq.s32.totalorder %s14, 1
    %p74 = por %p72, %p73
    %p75 = scmp.ne.s32.totalorder %s66, %s67
    %p76 = scmp.eq.s32.totalorder %s14, 0
    %p77 = por %p75, %p76
    %p78 = scmp.ne.s32.totalorder %s66, %s67
    %p79 = scmp.eq.s32.totalorder %s15, 1
    %p80 = por %p78, %p79
    %p82 = scmp.ne.s32.totalorder %s67, %s81
    %p83 = scmp.eq.s32.totalorder %s15, 0
    %p84 = por %p82, %p83
    %s85 = ssub.s32 %s9, %s16
    %p86 = scmp.eq.s32.totalorder %s85, 0
    %s88 = sadd.s32 %s87, 1
    %s89 = scalar_select %p86, %s87, %s88
    %p92 = pneg %p86
    %p93 = scmp.eq.s32.totalorder %s9, 1
    %p94 = por %p92, %p93
    %p95 = scmp.ne.s32.totalorder %s87, %s90
    %p96 = scmp.eq.s32.totalorder %s9, 0
    %p97 = por %p95, %p96
    %p98 = scmp.ne.s32.totalorder %s87, %s90
    %p99 = scmp.eq.s32.totalorder %s14, 1
    %p100 = por %p98, %p99
    %p101 = scmp.ne.s32.totalorder %s90, %s91
    %p102 = scmp.eq.s32.totalorder %s14, 0
    %p103 = por %p101, %p102
    %p104 = scmp.ne.s32.totalorder %s90, %s91
    %p105 = scmp.eq.s32.totalorder %s15, 1
    %p106 = por %p104, %p105
    %p108 = scmp.ne.s32.totalorder %s91, %s107
    %p109 = scmp.eq.s32.totalorder %s15, 0
    %p110 = por %p108, %p109
    %p111 = scmp.le.s32.totalorder 1, %s9
    %p112 = scmp.lt.s32.totalorder %s9, 3
    %p113 = pnand %p111, %p112
    %p114 = pneg %p113
    // Predicated region
    $region9: #{residual_block.1} parent=5 // pred_check
      _
    $region10: #{residual_block.1} parent=5 // pred_check_branch
      %116 = sbr.rel (%p113) target = $region12
    $region11: #{residual_block.1} parent=5 // pred_region
      %s117 = ssub.s32 %s9, 1
      // Predicated region
      $region13: #{residual_block.1} parent=11 // pred_check
        %p118 = pneg %p56
      $region14: #{residual_block.1} parent=11 // pred_check_branch
        %120 = sbr.rel (%p118) target = $region16
      $region15: #{residual_block.1} parent=11 // pred_region
        _
      $region16: #{residual_block.1} parent=11 // pred_fallthru
        _
      // Predicated region
      $region17: #{residual_block.1} parent=11 // pred_check
        %p121 = pneg %p77
      $region18: #{residual_block.1} parent=11 // pred_check_branch
        %123 = sbr.rel (%p121) target = $region20
      $region19: #{residual_block.1} parent=11 // pred_region
        _
      $region20: #{residual_block.1} parent=11 // pred_fallthru
        _
    $region12: #{residual_block.1} parent=5 // pred_fallthru
      _
    %p124 = scmp.lt.s32.totalorder %s9, 2
    // Predicated region
    $region21: #{residual_block.1} parent=5 // pred_check
      %p125 = pneg %p124
    $region22: #{residual_block.1} parent=5 // pred_check_branch
      %127 = sbr.rel (%p125) target = $region24
    $region23: #{residual_block.1} parent=5 // pred_region
      // Predicated region
      $region25: #{residual_block.1} parent=23 // pred_check
        %p128 = pneg %p29
      $region26: #{residual_block.1} parent=23 // pred_check_branch
        %130 = sbr.rel (%p128) target = $region28
      $region27: #{residual_block.1} parent=23 // pred_region
        %p131 = scmp.lt.s32.totalorder %s9, 1
        %s132 = scalar_select %p131, %s9, 1
        %s133 = smul.addr %s132, 3
        %s134 = smul.addr %s133, 4
        %s135 = scalar_lea.vmem %s0, %s134
      $region28: #{residual_block.1} parent=23 // pred_fallthru
        _
    $region24: #{residual_block.1} parent=5 // pred_fallthru
      _
    %p136 = scmp.le.s32.totalorder 1, %s9
    %p137 = scmp.lt.s32.totalorder %s9, 3
    %p138 = pnand %p136, %p137
    %p139 = pneg %p138
    // Predicated region
    $region29: #{residual_block.1} parent=5 // pred_check
      _
    $region30: #{residual_block.1} parent=5 // pred_check_branch
      %141 = sbr.rel (%p138) target = $region32
    $region31: #{residual_block.1} parent=5 // pred_region
      %s142 = ssub.s32 %s9, 1
      %p143 = scmp.lt.s32.totalorder %s14, 1
      %s144 = scalar_select %p143, %s14, 1
      %s145 = smul.addr %s144, 3
      %s146 = smul.addr %s145, 4
      %s147 = scalar_lea.vmem %s0, %s146
      %p148 = pneg %p35
      %p149 = pneg %p32
      %p150 = pneg %p56
      %p151 = pneg %p53
      %p152 = pneg %p77
      %p153 = pneg %p74
      %p154 = pneg %p103
      %p155 = pneg %p100
      %p156 = scmp.lt.s32.totalorder %s14, 1
      %s157 = scalar_select %p156, %s14, 1
      %s158 = smul.addr %s157, 3
      %s159 = smul.addr %s158, 4
      %s160 = scalar_lea.vmem %s3, %s159
      %p161 = scmp.lt.s32.totalorder %s14, 1
      %s162 = scalar_select %p161, %s14, 1
      %s163 = smul.addr %s162, 3
      %s164 = smul.addr %s163, 4
      %s165 = scalar_lea.vmem %s0, %s164
      %p166 = scmp.lt.s32.totalorder %s14, 1
      %s167 = scalar_select %p166, %s14, 1
      %s168 = smul.addr %s167, 3
      %s169 = smul.addr %s168, 4
      %s170 = scalar_lea.vmem %s3, %s169
      %v172 = vlaneseq
      %v173 = vand.u32 %v172, 127
      %v174 = vadd.s32 %v173, 128
      %v175 = vadd.s32 %v173, 256
      %vm176 = vcmp.lt.s32.totalorder %v173, 0
      %v177 = vsub.s32 0, %v173
      %v178 = vsel %vm176, %v177, %v173
      %v179 = vmul.u32.u64.compose %v178, 3817748708
      %v180 = vextract.low.u32 %v179
      %v181 = vextract.high.u32 %v179
      %v182 = vshrl.u32 %v181, 4
      %v183 = vmul.u32 %v182, 18
      %v184 = vsub.s32 %v178, %v183
      %v185 = vsub.s32 0, %v184
      %v186 = vsel %vm176, %v185, %v184
      %vm187 = vcmp.lt.s32.totalorder %v174, 0
      %v188 = vsub.s32 0, %v174
      %v189 = vsel %vm187, %v188, %v174
      %v190 = vmul.u32.u64.compose %v189, 3817748708
      %v191 = vextract.low.u32 %v190
      %v192 = vextract.high.u32 %v190
      %v193 = vshrl.u32 %v192, 4
      %v194 = vmul.u32 %v193, 18
      %v195 = vsub.s32 %v189, %v194
      %v196 = vsub.s32 0, %v195
      %v197 = vsel %vm187, %v196, %v195
      %vm198 = vcmp.lt.s32.totalorder %v175, 0
      %v199 = vsub.s32 0, %v175
      %v200 = vsel %vm198, %v199, %v175
      %v201 = vmul.u32.u64.compose %v200, 3817748708
      %v202 = vextract.low.u32 %v201
      %v203 = vextract.high.u32 %v201
      %v204 = vshrl.u32 %v203, 4
      %v205 = vmul.u32 %v204, 18
      %v206 = vsub.s32 %v200, %v205
      %v207 = vsub.s32 0, %v206
      %v208 = vsel %vm198, %v207, %v206
      %vm209 = vcmp.ne.s32.totalorder %v186, 0
      %vm210 = vcmp.ne.s32.totalorder %v197, 0
      %vm211 = vcmp.ne.s32.totalorder %v208, 0
      %vm212 = vcmp.lt.s32.totalorder %v186, 0
      %vm213 = vcmp.lt.s32.totalorder %v197, 0
      %vm214 = vcmp.lt.s32.totalorder %v208, 0
      %vm215 = vmand %vm212, %vm209
      %vm216 = vmand %vm213, %vm210
      %vm217 = vmand %vm214, %vm211
      %v218 = vadd.s32 %v186, 18
      %v219 = vadd.s32 %v197, 18
      %v220 = vadd.s32 %v208, 18
      %v221 = vsel %vm215, %v218, %v186
      %v222 = vsel %vm216, %v219, %v197
      %v223 = vsel %vm217, %v220, %v208
      %vm224 = vcmp.ge.s32.totalorder %v221, 1
      %vm225 = vcmp.ge.s32.totalorder %v222, 1
      %vm226 = vcmp.ge.s32.totalorder %v223, 1
      %vm227 = vcmp.le.s32.totalorder %v221, 16
      %vm228 = vcmp.le.s32.totalorder %v222, 16
      %vm229 = vcmp.le.s32.totalorder %v223, 16
      %vm230 = vmand %vm224, %vm227
      %vm231 = vmand %vm225, %vm228
      %vm232 = vmand %vm226, %vm229
      %vm233 = vcmp.eq.s32.totalorder %v221, 0
      %vm234 = vcmp.eq.s32.totalorder %v222, 0
      %vm235 = vcmp.eq.s32.totalorder %v223, 0
      %vm236 = vcmp.eq.s32.totalorder %v221, 17
      %vm237 = vcmp.eq.s32.totalorder %v222, 17
      %vm238 = vcmp.eq.s32.totalorder %v223, 17
      %vm239 = vcmask 1024
      %240 = vst.msk [vmem:[#allocation2] sm:$0x3] %vm239, 0
      %vm241 = vcmask 566824
      %242 = vst.msk [vmem:[#allocation2 + $0x4] sm:$0x3] %vm241, 0
      %v243 = vld [vmem:[%s165] sm:$0xff]
      %v244 = vld [vmem:[%s165 + $0x8] sm:$0xf]
      %v246 = vcombine.high %v243, %v243
      %v248 = vpack.c.bf16 %v243, %v243
      %v249 = vpack.c.bf16 %v246, %v246
      %v250 = vpack.c.bf16 %v244, %v244
      %v253 = vunpack.c.l.s4 1983009808
      %v254 = vunpack.c.0.s8 %v253
      %v255 = vlaneseq
      %v256 = vshrl.u32 %v255, 7
      %v257 = vsub.s32 %v254, %v256
      %v258 = vrot.slane %v248, %v257
      %259 = vrot.lane.b32.xlu0 %v258, 111
      %v260 = vpop.permute.xlu0 %259
      %vm262 = vcmask 148488
      %263 = vst.msk [vmem:[#allocation2] sm:$0x3] %vm262, %v260
      %v266 = vcombine.low %v248, %v249
      %v268 = vunpack.c.l.s4 1983009808
      %v269 = vunpack.c.0.s8 %v268
      %v270 = vlaneseq
      %v271 = vshrl.u32 %v270, 7
      %v272 = vsub.s32 %v269, %v271
      %v273 = vrot.slane %v266, %v272
      %v275 = vunpack.c.l.s4 1983009808
      %v276 = vunpack.c.0.s8 %v275
      %v277 = vlaneseq
      %v278 = vshrl.u32 %v277, 7
      %v279 = vsub.s32 %v276, %v278
      %v280 = vrot.slane %v250, %v279
      %v281 = vcombine.low %v273, %v280
      %282 = vrot.lane.b32.xlu0 %v281, 19
      %v283 = vpop.permute.xlu0 %282
      %v284 = vrot.slane %v283, 6
      %vm285 = vcmask 154624
      %v286 = vsel %vm285, %v284, %v283
      %vm288 = vcmask 1041560
      %vm289 = vcmask 1043458
      %vm290 = vmor %vm289, %vm288
      %vm291 = vcmask 414724
      %vm292 = vmor %vm291, %vm290
      %293 = vst.msk [vmem:[#allocation2] sm:$0x3f] %vm292, %v286
      %v294 = vcombine.low %v249, %v250
      %v296 = vunpack.c.l.s4 1983009808
      %v297 = vunpack.c.0.s8 %v296
      %v298 = vlaneseq
      %v299 = vshrl.u32 %v298, 7
      %v300 = vsub.s32 %v297, %v299
      %v301 = vrot.slane %v294, %v300
      %302 = vrot.lane.b32.xlu0 %v301, 55
      %v303 = vpop.permute.xlu0 %302
      %v304 = vrot.slane %v303, 2
      %vm305 = vcmask 449536
      %v306 = vsel %vm305, %v303, %v304
      %vm308 = vcmask 558488
      %309 = vst.msk [vmem:[#allocation2 + $0x4] sm:$0x3] %vm308, %v306
      %v310 = vld [vmem:[%s1] sm:$0x3]
      %v311 = vld [vmem:[#allocation2] sm:$0x3f]
      %s312 = scalar_lea.vmem %s1, 2
      %v313 = vld [vmem:[%s312] sm:$0x3]
      %v315 = vcombine.high %v311, %v311
      %v317 = vunpack.c.l.s4 1983009808
      %v318 = vunpack.c.0.s8 %v317
      %v319 = vlaneseq
      %v320 = vshrl.u32 %v319, 7
      %v321 = vsub.s32 %v318, %v320
      %v322 = vrot.slane %v311, %v321
      %v324 = vunpack.c.l.s4 1983009808
      %v325 = vunpack.c.0.s8 %v324
      %v326 = vlaneseq
      %v327 = vshrl.u32 %v326, 7
      %v328 = vsub.s32 %v325, %v327
      %v329 = vrot.slane %v315, %v328
      %v330 = vcombine.high %v322, %v322
      %331 = vrot.lane.b32.xlu0 %v322, 127
      %v332 = vpop.permute.xlu0 %331
      %333 = vrot.lane.b32.xlu0 %v330, 127
      %v334 = vpop.permute.xlu0 %333
      %335 = vrot.lane.b32.xlu0 %v329, 127
      %v336 = vpop.permute.xlu0 %335
      %vm337 = vcmask 1039360
      %v338 = vsel %vm337, %v332, %v334
      %v339 = vsel %vm337, %v334, %v336
      %vm340 = vcmask 31744
      %v342 = vsel %vm340, %v313, 0
      %vm344 = vcmask 1041408
      %v346 = vsel %vm344, %v338, 0
      %v349 = vsel %vm344, %v339, 0
      %v352 = vsel %vm344, %v336, 0
      %354 = vmatprep.subr.bf16.mxu0 %v349
      %355 = vmatpush1.bf16.msra.mxu0 %v346
      %356 = vmatprep.subr.bf16.mxu0 0
      %357 = vmatpush1.bf16.msra.mxu0 0
      %358 = vmatprep.subr.bf16.mxu0 0
      %359 = vmatpush1.bf16.msra.mxu0 0
      %360 = vmatprep.subr.bf16.mxu0 0
      %361 = vmatpush1.bf16.msra.mxu0 0
      %362 = vmatprep.subr.bf16.mxu0 0
      %363 = vmatpush1.bf16.msra.mxu0 0
      %364 = vmatprep.subr.bf16.mxu0 0
      %365 = vmatpush1.bf16.msra.mxu0 0
      %366 = vmatprep.subr.bf16.mxu0 0
      %367 = vmatpush1.bf16.msra.mxu0 0
      %368 = vmatprep.subr.bf16.mxu0 0
      %369 = vmatpush1.bf16.msra.mxu0 0
      %370 = vmatprep.subr.bf16.mxu0 0
      %371 = vmatpush1.bf16.msra.mxu0 0
      %372 = vmatprep.subr.bf16.mxu0 0
      %373 = vmatpush1.bf16.msra.mxu0 0
      %374 = vmatprep.subr.bf16.mxu0 0
      %375 = vmatpush1.bf16.msra.mxu0 0
      %376 = vmatprep.subr.bf16.mxu0 0
      %377 = vmatpush1.bf16.msra.mxu0 0
      %378 = vmatprep.subr.bf16.mxu0 0
      %379 = vmatpush1.bf16.msra.mxu0 0
      %380 = vmatprep.subr.bf16.mxu0 0
      %381 = vmatpush1.bf16.msra.mxu0 0
      %382 = vmatprep.subr.bf16.mxu0 0
      %383 = vmatpush1.bf16.msra.mxu0 0
      %384 = vmatprep.subr.bf16.mxu0 0
      %385 = vmatpush1.bf16.msra.mxu0 0
      %386 = vmatprep.mubr.bf16.mxu0 0
      %387 = vmatmul.mubr.bf16.gmra.mrb[0].mxu0 %v342
      %v388 = vpop.f32.mrb[0].mxu0
      %v389 = vadd.f32 0.0, %v388
      %v390 = vpop.f32.mrb[0].mxu0
      %v391 = vadd.f32 0.0, %v390
      %v392 = vpop.f32.mrb[0].mxu0
      %v393 = vpop.f32.mrb[0].mxu0
      %394 = vdwg.mxu0
      %395 = vmatprep.subr.bf16.mxu0 0
      %396 = vmatpush1.bf16.msra.mxu0 %v352
      %397 = vmatprep.subr.bf16.mxu0 0
      %398 = vmatpush1.bf16.msra.mxu0 0
      %399 = vmatprep.subr.bf16.mxu0 0
      %400 = vmatpush1.bf16.msra.mxu0 0
      %401 = vmatprep.subr.bf16.mxu0 0
      %402 = vmatpush1.bf16.msra.mxu0 0
      %403 = vmatprep.subr.bf16.mxu0 0
      %404 = vmatpush1.bf16.msra.mxu0 0
      %405 = vmatprep.subr.bf16.mxu0 0
      %406 = vmatpush1.bf16.msra.mxu0 0
      %407 = vmatprep.subr.bf16.mxu0 0
      %408 = vmatpush1.bf16.msra.mxu0 0
      %409 = vmatprep.subr.bf16.mxu0 0
      %410 = vmatpush1.bf16.msra.mxu0 0
      %411 = vmatprep.subr.bf16.mxu0 0
      %412 = vmatpush1.bf16.msra.mxu0 0
      %413 = vmatprep.subr.bf16.mxu0 0
      %414 = vmatpush1.bf16.msra.mxu0 0
      %415 = vmatprep.subr.bf16.mxu0 0
      %416 = vmatpush1.bf16.msra.mxu0 0
      %417 = vmatprep.subr.bf16.mxu0 0
      %418 = vmatpush1.bf16.msra.mxu0 0
      %419 = vmatprep.subr.bf16.mxu0 0
      %420 = vmatpush1.bf16.msra.mxu0 0
      %421 = vmatprep.subr.bf16.mxu0 0
      %422 = vmatpush1.bf16.msra.mxu0 0
      %423 = vmatprep.subr.bf16.mxu0 0
      %424 = vmatpush1.bf16.msra.mxu0 0
      %425 = vmatprep.subr.bf16.mxu0 0
      %426 = vmatpush1.bf16.msra.mxu0 0
      %427 = vmatprep.mubr.bf16.mxu0 0
      %428 = vmatmul.mubr.bf16.gmra.mrb[0].mxu0 %v342
      %v429 = vpop.f32.mrb[0].mxu0
      %v430 = vadd.f32 0.0, %v429
      %v431 = vpop.f32.mrb[0].mxu0
      %v432 = vpop.f32.mrb[0].mxu0
      %v433 = vpop.f32.mrb[0].mxu0
      %434 = vdwg.mxu0
      %v436 = vsel %vm340, %v310, 0
      %v439 = vsel %vm344, %v322, 0
      %v442 = vsel %vm344, %v330, 0
      %v445 = vsel %vm344, %v329, 0
      %447 = vmatprep.subr.bf16.mxu0 %v442
      %448 = vmatpush1.bf16.msra.mxu0 %v439
      %449 = vmatprep.subr.bf16.mxu0 0
      %450 = vmatpush1.bf16.msra.mxu0 0
      %451 = vmatprep.subr.bf16.mxu0 0
      %452 = vmatpush1.bf16.msra.mxu0 0
      %453 = vmatprep.subr.bf16.mxu0 0
      %454 = vmatpush1.bf16.msra.mxu0 0
      %455 = vmatprep.subr.bf16.mxu0 0
      %456 = vmatpush1.bf16.msra.mxu0 0
      %457 = vmatprep.subr.bf16.mxu0 0
      %458 = vmatpush1.bf16.msra.mxu0 0
      %459 = vmatprep.subr.bf16.mxu0 0
      %460 = vmatpush1.bf16.msra.mxu0 0
      %461 = vmatprep.subr.bf16.mxu0 0
      %462 = vmatpush1.bf16.msra.mxu0 0
      %463 = vmatprep.subr.bf16.mxu0 0
      %464 = vmatpush1.bf16.msra.mxu0 0
      %465 = vmatprep.subr.bf16.mxu0 0
      %466 = vmatpush1.bf16.msra.mxu0 0
      %467 = vmatprep.subr.bf16.mxu0 0
      %468 = vmatpush1.bf16.msra.mxu0 0
      %469 = vmatprep.subr.bf16.mxu0 0
      %470 = vmatpush1.bf16.msra.mxu0 0
      %471 = vmatprep.subr.bf16.mxu0 0
      %472 = vmatpush1.bf16.msra.mxu0 0
      %473 = vmatprep.subr.bf16.mxu0 0
      %474 = vmatpush1.bf16.msra.mxu0 0
      %475 = vmatprep.subr.bf16.mxu0 0
      %476 = vmatpush1.bf16.msra.mxu0 0
      %477 = vmatprep.subr.bf16.mxu0 0
      %478 = vmatpush1.bf16.msra.mxu0 0
      %479 = vmatprep.mubr.bf16.mxu0 0
      %480 = vmatmul.mubr.bf16.gmra.mrb[0].mxu0 %v436
      %v481 = vpop.f32.mrb[0].mxu0
      %v482 = vadd.f32 %v389, %v481
      %v483 = vpop.f32.mrb[0].mxu0
      %v484 = vadd.f32 %v391, %v483
      %v485 = vpop.f32.mrb[0].mxu0
      %v486 = vpop.f32.mrb[0].mxu0
      %487 = vdwg.mxu0
      %488 = vmatprep.subr.bf16.mxu0 0
      %489 = vmatpush1.bf16.msra.mxu0 %v445
      %490 = vmatprep.subr.bf16.mxu0 0
      %491 = vmatpush1.bf16.msra.mxu0 0
      %492 = vmatprep.subr.bf16.mxu0 0
      %493 = vmatpush1.bf16.msra.mxu0 0
      %494 = vmatprep.subr.bf16.mxu0 0
      %495 = vmatpush1.bf16.msra.mxu0 0
      %496 = vmatprep.subr.bf16.mxu0 0
      %497 = vmatpush1.bf16.msra.mxu0 0
      %498 = vmatprep.subr.bf16.mxu0 0
      %499 = vmatpush1.bf16.msra.mxu0 0
      %500 = vmatprep.subr.bf16.mxu0 0
      %501 = vmatpush1.bf16.msra.mxu0 0
      %502 = vmatprep.subr.bf16.mxu0 0
      %503 = vmatpush1.bf16.msra.mxu0 0
      %504 = vmatprep.subr.bf16.mxu0 0
      %505 = vmatpush1.bf16.msra.mxu0 0
      %506 = vmatprep.subr.bf16.mxu0 0
      %507 = vmatpush1.bf16.msra.mxu0 0
      %508 = vmatprep.subr.bf16.mxu0 0
      %509 = vmatpush1.bf16.msra.mxu0 0
      %510 = vmatprep.subr.bf16.mxu0 0
      %511 = vmatpush1.bf16.msra.mxu0 0
      %512 = vmatprep.subr.bf16.mxu0 0
      %513 = vmatpush1.bf16.msra.mxu0 0
      %514 = vmatprep.subr.bf16.mxu0 0
      %515 = vmatpush1.bf16.msra.mxu0 0
      %516 = vmatprep.subr.bf16.mxu0 0
      %517 = vmatpush1.bf16.msra.mxu0 0
      %518 = vmatprep.subr.bf16.mxu0 0
      %519 = vmatpush1.bf16.msra.mxu0 0
      %520 = vmatprep.mubr.bf16.mxu0 0
      %521 = vmatmul.mubr.bf16.gmra.mrb[0].mxu0 %v436
      %v522 = vpop.f32.mrb[0].mxu0
      %v523 = vadd.f32 %v430, %v522
      %v524 = vpop.f32.mrb[0].mxu0
      %v525 = vpop.f32.mrb[0].mxu0
      %v526 = vpop.f32.mrb[0].mxu0
      %527 = vdwg.mxu0
      %s528 = scalar_lea.vmem %s1, 4
      %v529 = vld [vmem:[%s528] sm:$0x3]
      %v530 = vld [vmem:[#allocation2] sm:$0x3f]
      %v532 = vcombine.high %v530, %v530
      %v534 = vunpack.c.l.s4 1983009808
      %v535 = vunpack.c.0.s8 %v534
      %v536 = vlaneseq
      %v537 = vshrl.u32 %v536, 7
      %v538 = vsub.s32 %v535, %v537
      %v539 = vrot.slane %v530, %v538
      %v541 = vunpack.c.l.s4 1983009808
      %v542 = vunpack.c.0.s8 %v541
      %v543 = vlaneseq
      %v544 = vshrl.u32 %v543, 7
      %v545 = vsub.s32 %v542, %v544
      %v546 = vrot.slane %v532, %v545
      %v547 = vcombine.high %v539, %v539
      %548 = vrot.lane.b32.xlu0 %v539, 126
      %v549 = vpop.permute.xlu0 %548
      %550 = vrot.lane.b32.xlu0 %v547, 126
      %v551 = vpop.permute.xlu0 %550
      %552 = vrot.lane.b32.xlu0 %v546, 126
      %v553 = vpop.permute.xlu0 %552
      %vm554 = vcmask 1031168
      %v555 = vsel %vm554, %v549, %v551
      %v556 = vsel %vm554, %v551, %v553
      %v558 = vsel %vm340, %v529, 0
      %v561 = vsel %vm344, %v555, 0
      %v564 = vsel %vm344, %v556, 0
      %v567 = vsel %vm344, %v553, 0
      %569 = vmatprep.subr.bf16.mxu0 %v564
      %570 = vmatpush1.bf16.msra.mxu0 %v561
      %571 = vmatprep.subr.bf16.mxu0 0
      %572 = vmatpush1.bf16.msra.mxu0 0
      %573 = vmatprep.subr.bf16.mxu0 0
      %574 = vmatpush1.bf16.msra.mxu0 0
      %575 = vmatprep.subr.bf16.mxu0 0
      %576 = vmatpush1.bf16.msra.mxu0 0
      %577 = vmatprep.subr.bf16.mxu0 0
      %578 = vmatpush1.bf16.msra.mxu0 0
      %579 = vmatprep.subr.bf16.mxu0 0
      %580 = vmatpush1.bf16.msra.mxu0 0
      %581 = vmatprep.subr.bf16.mxu0 0
      %582 = vmatpush1.bf16.msra.mxu0 0
      %583 = vmatprep.subr.bf16.mxu0 0
      %584 = vmatpush1.bf16.msra.mxu0 0
      %585 = vmatprep.subr.bf16.mxu0 0
      %586 = vmatpush1.bf16.msra.mxu0 0
      %587 = vmatprep.subr.bf16.mxu0 0
      %588 = vmatpush1.bf16.msra.mxu0 0
      %589 = vmatprep.subr.bf16.mxu0 0
      %590 = vmatpush1.bf16.msra.mxu0 0
      %591 = vmatprep.subr.bf16.mxu0 0
      %592 = vmatpush1.bf16.msra.mxu0 0
      %593 = vmatprep.subr.bf16.mxu0 0
      %594 = vmatpush1.bf16.msra.mxu0 0
      %595 = vmatprep.subr.bf16.mxu0 0
      %596 = vmatpush1.bf16.msra.mxu0 0
      %597 = vmatprep.subr.bf16.mxu0 0
      %598 = vmatpush1.bf16.msra.mxu0 0
      %599 = vmatprep.subr.bf16.mxu0 0
      %600 = vmatpush1.bf16.msra.mxu0 0
      %601 = vmatprep.mubr.bf16.mxu0 0
      %602 = vmatmul.mubr.bf16.gmra.mrb[0].mxu0 %v558
      %v603 = vpop.f32.mrb[0].mxu0
      %v604 = vadd.f32 0.0, %v603
      %v605 = vpop.f32.mrb[0].mxu0
      %v606 = vadd.f32 0.0, %v605
      %v607 = vpop.f32.mrb[0].mxu0
      %v608 = vpop.f32.mrb[0].mxu0
      %609 = vdwg.mxu0
      %610 = vmatprep.subr.bf16.mxu0 0
      %611 = vmatpush1.bf16.msra.mxu0 %v567
      %612 = vmatprep.subr.bf16.mxu0 0
      %613 = vmatpush1.bf16.msra.mxu0 0
      %614 = vmatprep.subr.bf16.mxu0 0
      %615 = vmatpush1.bf16.msra.mxu0 0
      %616 = vmatprep.subr.bf16.mxu0 0
      %617 = vmatpush1.bf16.msra.mxu0 0
      %618 = vmatprep.subr.bf16.mxu0 0
      %619 = vmatpush1.bf16.msra.mxu0 0
      %620 = vmatprep.subr.bf16.mxu0 0
      %621 = vmatpush1.bf16.msra.mxu0 0
      %622 = vmatprep.subr.bf16.mxu0 0
      %623 = vmatpush1.bf16.msra.mxu0 0
      %624 = vmatprep.subr.bf16.mxu0 0
      %625 = vmatpush1.bf16.msra.mxu0 0
      %626 = vmatprep.subr.bf16.mxu0 0
      %627 = vmatpush1.bf16.msra.mxu0 0
      %628 = vmatprep.subr.bf16.mxu0 0
      %629 = vmatpush1.bf16.msra.mxu0 0
      %630 = vmatprep.subr.bf16.mxu0 0
      %631 = vmatpush1.bf16.msra.mxu0 0
      %632 = vmatprep.subr.bf16.mxu0 0
      %633 = vmatpush1.bf16.msra.mxu0 0
      %634 = vmatprep.subr.bf16.mxu0 0
      %635 = vmatpush1.bf16.msra.mxu0 0
      %636 = vmatprep.subr.bf16.mxu0 0
      %637 = vmatpush1.bf16.msra.mxu0 0
      %638 = vmatprep.subr.bf16.mxu0 0
      %639 = vmatpush1.bf16.msra.mxu0 0
      %640 = vmatprep.subr.bf16.mxu0 0
      %641 = vmatpush1.bf16.msra.mxu0 0
      %642 = vmatprep.mubr.bf16.mxu0 0
      %643 = vmatmul.mubr.bf16.gmra.mrb[0].mxu0 %v558
      %v644 = vpop.f32.mrb[0].mxu0
      %v645 = vadd.f32 0.0, %v644
      %v646 = vpop.f32.mrb[0].mxu0
      %v647 = vpop.f32.mrb[0].mxu0
      %v648 = vpop.f32.mrb[0].mxu0
      %649 = vdwg.mxu0
      %v650 = vadd.f32 %v482, %v604
      %v651 = vadd.f32 %v484, %v606
      %v652 = vadd.f32 %v523, %v645
      %s653 = scalar_lea.vmem %s1, 6
      %v654 = vld [vmem:[%s653] sm:$0x3]
      %v655 = vld [vmem:[#allocation2] sm:$0x3f]
      %v657 = vcombine.high %v655, %v655
      %v659 = vunpack.c.l.s4 1983009808
      %v660 = vunpack.c.0.s8 %v659
      %v661 = vlaneseq
      %v662 = vshrl.u32 %v661, 7
      %v663 = vsub.s32 %v660, %v662
      %v664 = vrot.slane %v655, %v663
      %v666 = vunpack.c.l.s4 1983009808
      %v667 = vunpack.c.0.s8 %v666
      %v668 = vlaneseq
      %v669 = vshrl.u32 %v668, 7
      %v670 = vsub.s32 %v667, %v669
      %v671 = vrot.slane %v657, %v670
      %v672 = vcombine.high %v664, %v664
      %673 = vrot.lane.b32.xlu0 %v664, 110
      %v674 = vpop.permute.xlu0 %673
      %675 = vrot.lane.b32.xlu0 %v672, 110
      %v676 = vpop.permute.xlu0 %675
      %677 = vrot.lane.b32.xlu0 %v671, 110
      %v678 = vpop.permute.xlu0 %677
      %vm679 = vcmask 900096
      %v680 = vsel %vm679, %v674, %v676
      %v681 = vsel %vm679, %v676, %v678
      %v683 = vsel %vm340, %v654, 0
      %v686 = vsel %vm344, %v680, 0
      %v689 = vsel %vm344, %v681, 0
      %v692 = vsel %vm344, %v678, 0
      %694 = vmatprep.subr.bf16.mxu0 %v689
      %695 = vmatpush1.bf16.msra.mxu0 %v686
      %696 = vmatprep.subr.bf16.mxu0 0
      %697 = vmatpush1.bf16.msra.mxu0 0
      %698 = vmatprep.subr.bf16.mxu0 0
      %699 = vmatpush1.bf16.msra.mxu0 0
      %700 = vmatprep.subr.bf16.mxu0 0
      %701 = vmatpush1.bf16.msra.mxu0 0
      %702 = vmatprep.subr.bf16.mxu0 0
      %703 = vmatpush1.bf16.msra.mxu0 0
      %704 = vmatprep.subr.bf16.mxu0 0
      %705 = vmatpush1.bf16.msra.mxu0 0
      %706 = vmatprep.subr.bf16.mxu0 0
      %707 = vmatpush1.bf16.msra.mxu0 0
      %708 = vmatprep.subr.bf16.mxu0 0
      %709 = vmatpush1.bf16.msra.mxu0 0
      %710 = vmatprep.subr.bf16.mxu0 0
      %711 = vmatpush1.bf16.msra.mxu0 0
      %712 = vmatprep.subr.bf16.mxu0 0
      %713 = vmatpush1.bf16.msra.mxu0 0
      %714 = vmatprep.subr.bf16.mxu0 0
      %715 = vmatpush1.bf16.msra.mxu0 0
      %716 = vmatprep.subr.bf16.mxu0 0
      %717 = vmatpush1.bf16.msra.mxu0 0
      %718 = vmatprep.subr.bf16.mxu0 0
      %719 = vmatpush1.bf16.msra.mxu0 0
      %720 = vmatprep.subr.bf16.mxu0 0
      %721 = vmatpush1.bf16.msra.mxu0 0
      %722 = vmatprep.subr.bf16.mxu0 0
      %723 = vmatpush1.bf16.msra.mxu0 0
      %724 = vmatprep.subr.bf16.mxu0 0
      %725 = vmatpush1.bf16.msra.mxu0 0
      %726 = vmatprep.mubr.bf16.mxu0 0
      %727 = vmatmul.mubr.bf16.gmra.mrb[0].mxu0 %v683
      %v728 = vpop.f32.mrb[0].mxu0
      %v729 = vadd.f32 0.0, %v728
      %v730 = vpop.f32.mrb[0].mxu0
      %v731 = vadd.f32 0.0, %v730
      %v732 = vpop.f32.mrb[0].mxu0
      %v733 = vpop.f32.mrb[0].mxu0
      %734 = vdwg.mxu0
      %735 = vmatprep.subr.bf16.mxu0 0
      %736 = vmatpush1.bf16.msra.mxu0 %v692
      %737 = vmatprep.subr.bf16.mxu0 0
      %738 = vmatpush1.bf16.msra.mxu0 0
      %739 = vmatprep.subr.bf16.mxu0 0
      %740 = vmatpush1.bf16.msra.mxu0 0
      %741 = vmatprep.subr.bf16.mxu0 0
      %742 = vmatpush1.bf16.msra.mxu0 0
      %743 = vmatprep.subr.bf16.mxu0 0
      %744 = vmatpush1.bf16.msra.mxu0 0
      %745 = vmatprep.subr.bf16.mxu0 0
      %746 = vmatpush1.bf16.msra.mxu0 0
      %747 = vmatprep.subr.bf16.mxu0 0
      %748 = vmatpush1.bf16.msra.mxu0 0
      %749 = vmatprep.subr.bf16.mxu0 0
      %750 = vmatpush1.bf16.msra.mxu0 0
      %751 = vmatprep.subr.bf16.mxu0 0
      %752 = vmatpush1.bf16.msra.mxu0 0
      %753 = vmatprep.subr.bf16.mxu0 0
      %754 = vmatpush1.bf16.msra.mxu0 0
      %755 = vmatprep.subr.bf16.mxu0 0
      %756 = vmatpush1.bf16.msra.mxu0 0
      %757 = vmatprep.subr.bf16.mxu0 0
      %758 = vmatpush1.bf16.msra.mxu0 0
      %759 = vmatprep.subr.bf16.mxu0 0
      %760 = vmatpush1.bf16.msra.mxu0 0
      %761 = vmatprep.subr.bf16.mxu0 0
      %762 = vmatpush1.bf16.msra.mxu0 0
      %763 = vmatprep.subr.bf16.mxu0 0
      %764 = vmatpush1.bf16.msra.mxu0 0
      %765 = vmatprep.subr.bf16.mxu0 0
      %766 = vmatpush1.bf16.msra.mxu0 0
      %767 = vmatprep.mubr.bf16.mxu0 0
      %768 = vmatmul.mubr.bf16.gmra.mrb[0].mxu0 %v683
      %v769 = vpop.f32.mrb[0].mxu0
      %v770 = vadd.f32 0.0, %v769
      %v771 = vpop.f32.mrb[0].mxu0
      %v772 = vpop.f32.mrb[0].mxu0
      %v773 = vpop.f32.mrb[0].mxu0
      %774 = vdwg.mxu0
      %v775 = vadd.f32 %v650, %v729
      %v776 = vadd.f32 %v651, %v731
      %v777 = vadd.f32 %v652, %v770
      %s778 = scalar_lea.vmem %s1, 8
      %v779 = vld [vmem:[%s778] sm:$0x3]
      %v780 = vld [vmem:[#allocation2] sm:$0x3f]
      %v782 = vcombine.high %v780, %v780
      %v784 = vunpack.c.l.s4 1983009808
      %v785 = vunpack.c.0.s8 %v784
      %v786 = vlaneseq
      %v787 = vshrl.u32 %v786, 7
      %v788 = vsub.s32 %v785, %v787
      %v789 = vrot.slane %v780, %v788
      %v791 = vunpack.c.l.s4 1983009808
      %v792 = vunpack.c.0.s8 %v791
      %v793 = vlaneseq
      %v794 = vshrl.u32 %v793, 7
      %v795 = vsub.s32 %v792, %v794
      %v796 = vrot.slane %v782, %v795
      %v797 = vcombine.high %v789, %v789
      %798 = vrot.lane.b32.xlu0 %v789, 109
      %v799 = vpop.permute.xlu0 %798
      %800 = vrot.lane.b32.xlu0 %v797, 109
      %v801 = vpop.permute.xlu0 %800
      %802 = vrot.lane.b32.xlu0 %v796, 109
      %v803 = vpop.permute.xlu0 %802
      %vm804 = vcmask 891904
      %v805 = vsel %vm804, %v799, %v801
      %v806 = vsel %vm804, %v801, %v803
      %v808 = vsel %vm340, %v779, 0
      %v811 = vsel %vm344, %v805, 0
      %v814 = vsel %vm344, %v806, 0
      %v817 = vsel %vm344, %v803, 0
      %819 = vmatprep.subr.bf16.mxu0 %v814
      %820 = vmatpush1.bf16.msra.mxu0 %v811
      %821 = vmatprep.subr.bf16.mxu0 0
      %822 = vmatpush1.bf16.msra.mxu0 0
      %823 = vmatprep.subr.bf16.mxu0 0
      %824 = vmatpush1.bf16.msra.mxu0 0
      %825 = vmatprep.subr.bf16.mxu0 0
      %826 = vmatpush1.bf16.msra.mxu0 0
      %827 = vmatprep.subr.bf16.mxu0 0
      %828 = vmatpush1.bf16.msra.mxu0 0
      %829 = vmatprep.subr.bf16.mxu0 0
      %830 = vmatpush1.bf16.msra.mxu0 0
      %831 = vmatprep.subr.bf16.mxu0 0
      %832 = vmatpush1.bf16.msra.mxu0 0
      %833 = vmatprep.subr.bf16.mxu0 0
      %834 = vmatpush1.bf16.msra.mxu0 0
      %835 = vmatprep.subr.bf16.mxu0 0
      %836 = vmatpush1.bf16.msra.mxu0 0
      %837 = vmatprep.subr.bf16.mxu0 0
      %838 = vmatpush1.bf16.msra.mxu0 0
      %839 = vmatprep.subr.bf16.mxu0 0
      %840 = vmatpush1.bf16.msra.mxu0 0
      %841 = vmatprep.subr.bf16.mxu0 0
      %842 = vmatpush1.bf16.msra.mxu0 0
      %843 = vmatprep.subr.bf16.mxu0 0
      %844 = vmatpush1.bf16.msra.mxu0 0
      %845 = vmatprep.subr.bf16.mxu0 0
      %846 = vmatpush1.bf16.msra.mxu0 0
      %847 = vmatprep.subr.bf16.mxu0 0
      %848 = vmatpush1.bf16.msra.mxu0 0
      %849 = vmatprep.subr.bf16.mxu0 0
      %850 = vmatpush1.bf16.msra.mxu0 0
      %851 = vmatprep.mubr.bf16.mxu0 0
      %852 = vmatmul.mubr.bf16.gmra.mrb[0].mxu0 %v808
      %v853 = vpop.f32.mrb[0].mxu0
      %v854 = vadd.f32 0.0, %v853
      %v855 = vpop.f32.mrb[0].mxu0
      %v856 = vadd.f32 0.0, %v855
      %v857 = vpop.f32.mrb[0].mxu0
      %v858 = vpop.f32.mrb[0].mxu0
      %859 = vdwg.mxu0
      %860 = vmatprep.subr.bf16.mxu0 0
      %861 = vmatpush1.bf16.msra.mxu0 %v817
      %862 = vmatprep.subr.bf16.mxu0 0
      %863 = vmatpush1.bf16.msra.mxu0 0
      %864 = vmatprep.subr.bf16.mxu0 0
      %865 = vmatpush1.bf16.msra.mxu0 0
      %866 = vmatprep.subr.bf16.mxu0 0
      %867 = vmatpush1.bf16.msra.mxu0 0
      %868 = vmatprep.subr.bf16.mxu0 0
      %869 = vmatpush1.bf16.msra.mxu0 0
      %870 = vmatprep.subr.bf16.mxu0 0
      %871 = vmatpush1.bf16.msra.mxu0 0
      %872 = vmatprep.subr.bf16.mxu0 0
      %873 = vmatpush1.bf16.msra.mxu0 0
      %874 = vmatprep.subr.bf16.mxu0 0
      %875 = vmatpush1.bf16.msra.mxu0 0
      %876 = vmatprep.subr.bf16.mxu0 0
      %877 = vmatpush1.bf16.msra.mxu0 0
      %878 = vmatprep.subr.bf16.mxu0 0
      %879 = vmatpush1.bf16.msra.mxu0 0
      %880 = vmatprep.subr.bf16.mxu0 0
      %881 = vmatpush1.bf16.msra.mxu0 0
      %882 = vmatprep.subr.bf16.mxu0 0
      %883 = vmatpush1.bf16.msra.mxu0 0
      %884 = vmatprep.subr.bf16.mxu0 0
      %885 = vmatpush1.bf16.msra.mxu0 0
      %886 = vmatprep.subr.bf16.mxu0 0
      %887 = vmatpush1.bf16.msra.mxu0 0
      %888 = vmatprep.subr.bf16.mxu0 0
      %889 = vmatpush1.bf16.msra.mxu0 0
      %890 = vmatprep.subr.bf16.mxu0 0
      %891 = vmatpush1.bf16.msra.mxu0 0
      %892 = vmatprep.mubr.bf16.mxu0 0
      %893 = vmatmul.mubr.bf16.gmra.mrb[0].mxu0 %v808
      %v894 = vpop.f32.mrb[0].mxu0
      %v895 = vadd.f32 0.0, %v894
      %v896 = vpop.f32.mrb[0].mxu0
      %v897 = vpop.f32.mrb[0].mxu0
      %v898 = vpop.f32.mrb[0].mxu0
      %899 = vdwg.mxu0
      %v900 = vadd.f32 %v775, %v854
      %v901 = vadd.f32 %v776, %v856
      %v902 = vadd.f32 %v777, %v895
      %s903 = scalar_lea.vmem %s1, 10
      %v904 = vld [vmem:[%s903] sm:$0x3]
      %v905 = vld [vmem:[#allocation2] sm:$0x3f]
      %v907 = vcombine.high %v905, %v905
      %v909 = vunpack.c.l.s4 1983009808
      %v910 = vunpack.c.0.s8 %v909
      %v911 = vlaneseq
      %v912 = vshrl.u32 %v911, 7
      %v913 = vsub.s32 %v910, %v912
      %v914 = vrot.slane %v905, %v913
      %v916 = vunpack.c.l.s4 1983009808
      %v917 = vunpack.c.0.s8 %v916
      %v918 = vlaneseq
      %v919 = vshrl.u32 %v918, 7
      %v920 = vsub.s32 %v917, %v919
      %v921 = vrot.slane %v907, %v920
      %v922 = vcombine.high %v914, %v914
      %923 = vrot.lane.b32.xlu0 %v914, 108
      %v924 = vpop.permute.xlu0 %923
      %925 = vrot.lane.b32.xlu0 %v922, 108
      %v926 = vpop.permute.xlu0 %925
      %927 = vrot.lane.b32.xlu0 %v921, 108
      %v928 = vpop.permute.xlu0 %927
      %vm929 = vcmask 883712
      %v930 = vsel %vm929, %v924, %v926
      %v931 = vsel %vm929, %v926, %v928
      %v933 = vsel %vm340, %v904, 0
      %v936 = vsel %vm344, %v930, 0
      %v939 = vsel %vm344, %v931, 0
      %v942 = vsel %vm344, %v928, 0
      %944 = vmatprep.subr.bf16.mxu0 %v939
      %945 = vmatpush1.bf16.msra.mxu0 %v936
      %946 = vmatprep.subr.bf16.mxu0 0
      %947 = vmatpush1.bf16.msra.mxu0 0
      %948 = vmatprep.subr.bf16.mxu0 0
      %949 = vmatpush1.bf16.msra.mxu0 0
      %950 = vmatprep.subr.bf16.mxu0 0
      %951 = vmatpush1.bf16.msra.mxu0 0
      %952 = vmatprep.subr.bf16.mxu0 0
      %953 = vmatpush1.bf16.msra.mxu0 0
      %954 = vmatprep.subr.bf16.mxu0 0
      %955 = vmatpush1.bf16.msra.mxu0 0
      %956 = vmatprep.subr.bf16.mxu0 0
      %957 = vmatpush1.bf16.msra.mxu0 0
      %958 = vmatprep.subr.bf16.mxu0 0
      %959 = vmatpush1.bf16.msra.mxu0 0
      %960 = vmatprep.subr.bf16.mxu0 0
      %961 = vmatpush1.bf16.msra.mxu0 0
      %962 = vmatprep.subr.bf16.mxu0 0
      %963 = vmatpush1.bf16.msra.mxu0 0
      %964 = vmatprep.subr.bf16.mxu0 0
      %965 = vmatpush1.bf16.msra.mxu0 0
      %966 = vmatprep.subr.bf16.mxu0 0
      %967 = vmatpush1.bf16.msra.mxu0 0
      %968 = vmatprep.subr.bf16.mxu0 0
      %969 = vmatpush1.bf16.msra.mxu0 0
      %970 = vmatprep.subr.bf16.mxu0 0
      %971 = vmatpush1.bf16.msra.mxu0 0
      %972 = vmatprep.subr.bf16.mxu0 0
      %973 = vmatpush1.bf16.msra.mxu0 0
      %974 = vmatprep.subr.bf16.mxu0 0
      %975 = vmatpush1.bf16.msra.mxu0 0
      %976 = vmatprep.mubr.bf16.mxu0 0
      %977 = vmatmul.mubr.bf16.gmra.mrb[0].mxu0 %v933
      %v978 = vpop.f32.mrb[0].mxu0
      %v979 = vadd.f32 0.0, %v978
      %v980 = vpop.f32.mrb[0].mxu0
      %v981 = vadd.f32 0.0, %v980
      %v982 = vpop.f32.mrb[0].mxu0
      %v983 = vpop.f32.mrb[0].mxu0
      %984 = vdwg.mxu0
      %985 = vmatprep.subr.bf16.mxu0 0
      %986 = vmatpush1.bf16.msra.mxu0 %v942
      %987 = vmatprep.subr.bf16.mxu0 0
      %988 = vmatpush1.bf16.msra.mxu0 0
      %989 = vmatprep.subr.bf16.mxu0 0
      %990 = vmatpush1.bf16.msra.mxu0 0
      %991 = vmatprep.subr.bf16.mxu0 0
      %992 = vmatpush1.bf16.msra.mxu0 0
      %993 = vmatprep.subr.bf16.mxu0 0
      %994 = vmatpush1.bf16.msra.mxu0 0
      %995 = vmatprep.subr.bf16.mxu0 0
      %996 = vmatpush1.bf16.msra.mxu0 0
      %997 = vmatprep.subr.bf16.mxu0 0
      %998 = vmatpush1.bf16.msra.mxu0 0
      %999 = vmatprep.subr.bf16.mxu0 0
      %1000 = vmatpush1.bf16.msra.mxu0 0
      %1001 = vmatprep.subr.bf16.mxu0 0
      %1002 = vmatpush1.bf16.msra.mxu0 0
      %1003 = vmatprep.subr.bf16.mxu0 0
      %1004 = vmatpush1.bf16.msra.mxu0 0
      %1005 = vmatprep.subr.bf16.mxu0 0
      %1006 = vmatpush1.bf16.msra.mxu0 0
      %1007 = vmatprep.subr.bf16.mxu0 0
      %1008 = vmatpush1.bf16.msra.mxu0 0
      %1009 = vmatprep.subr.bf16.mxu0 0
      %1010 = vmatpush1.bf16.msra.mxu0 0
      %1011 = vmatprep.subr.bf16.mxu0 0
      %1012 = vmatpush1.bf16.msra.mxu0 0
      %1013 = vmatprep.subr.bf16.mxu0 0
      %1014 = vmatpush1.bf16.msra.mxu0 0
      %1015 = vmatprep.subr.bf16.mxu0 0
      %1016 = vmatpush1.bf16.msra.mxu0 0
      %1017 = vmatprep.mubr.bf16.mxu0 0
      %1018 = vmatmul.mubr.bf16.gmra.mrb[0].mxu0 %v933
      %v1019 = vpop.f32.mrb[0].mxu0
      %v1020 = vadd.f32 0.0, %v1019
      %v1021 = vpop.f32.mrb[0].mxu0
      %v1022 = vpop.f32.mrb[0].mxu0
      %v1023 = vpop.f32.mrb[0].mxu0
      %1024 = vdwg.mxu0
      %v1025 = vadd.f32 %v900, %v979
      %v1026 = vadd.f32 %v901, %v981
      %v1027 = vadd.f32 %v902, %v1020
      %s1028 = scalar_lea.vmem %s1, 12
      %v1029 = vld [vmem:[%s1028] sm:$0x3]
      %v1030 = vld [vmem:[#allocation2] sm:$0x3f]
      %v1032 = vcombine.high %v1030, %v1030
      %v1034 = vunpack.c.l.s4 1983009808
      %v1035 = vunpack.c.0.s8 %v1034
      %v1036 = vlaneseq
      %v1037 = vshrl.u32 %v1036, 7
      %v1038 = vsub.s32 %v1035, %v1037
      %v1039 = vrot.slane %v1030, %v1038
      %v1041 = vunpack.c.l.s4 1983009808
      %v1042 = vunpack.c.0.s8 %v1041
      %v1043 = vlaneseq
      %v1044 = vshrl.u32 %v1043, 7
      %v1045 = vsub.s32 %v1042, %v1044
      %v1046 = vrot.slane %v1032, %v1045
      %v1047 = vcombine.high %v1039, %v1039
      %1048 = vrot.lane.b32.xlu0 %v1039, 92
      %v1049 = vpop.permute.xlu0 %1048
      %1050 = vrot.lane.b32.xlu0 %v1047, 92
      %v1051 = vpop.permute.xlu0 %1050
      %1052 = vrot.lane.b32.xlu0 %v1046, 92
      %v1053 = vpop.permute.xlu0 %1052
      %vm1054 = vcmask 752640
      %v1055 = vsel %vm1054, %v1049, %v1051
      %v1056 = vsel %vm1054, %v1051, %v1053
      %v1058 = vsel %vm340, %v1029, 0
      %v1061 = vsel %vm344, %v1055, 0
      %v1064 = vsel %vm344, %v1056, 0
      %v1067 = vsel %vm344, %v1053, 0
      %1069 = vmatprep.subr.bf16.mxu0 %v1064
      %1070 = vmatpush1.bf16.msra.mxu0 %v1061
      %1071 = vmatprep.subr.bf16.mxu0 0
      %1072 = vmatpush1.bf16.msra.mxu0 0
      %1073 = vmatprep.subr.bf16.mxu0 0
      %1074 = vmatpush1.bf16.msra.mxu0 0
      %1075 = vmatprep.subr.bf16.mxu0 0
      %1076 = vmatpush1.bf16.msra.mxu0 0
      %1077 = vmatprep.subr.bf16.mxu0 0
      %1078 = vmatpush1.bf16.msra.mxu0 0
      %1079 = vmatprep.subr.bf16.mxu0 0
      %1080 = vmatpush1.bf16.msra.mxu0 0
      %1081 = vmatprep.subr.bf16.mxu0 0
      %1082 = vmatpush1.bf16.msra.mxu0 0
      %1083 = vmatprep.subr.bf16.mxu0 0
      %1084 = vmatpush1.bf16.msra.mxu0 0
      %1085 = vmatprep.subr.bf16.mxu0 0
      %1086 = vmatpush1.bf16.msra.mxu0 0
      %1087 = vmatprep.subr.bf16.mxu0 0
      %1088 = vmatpush1.bf16.msra.mxu0 0
      %1089 = vmatprep.subr.bf16.mxu0 0
      %1090 = vmatpush1.bf16.msra.mxu0 0
      %1091 = vmatprep.subr.bf16.mxu0 0
      %1092 = vmatpush1.bf16.msra.mxu0 0
      %1093 = vmatprep.subr.bf16.mxu0 0
      %1094 = vmatpush1.bf16.msra.mxu0 0
      %1095 = vmatprep.subr.bf16.mxu0 0
      %1096 = vmatpush1.bf16.msra.mxu0 0
      %1097 = vmatprep.subr.bf16.mxu0 0
      %1098 = vmatpush1.bf16.msra.mxu0 0
      %1099 = vmatprep.subr.bf16.mxu0 0
      %1100 = vmatpush1.bf16.msra.mxu0 0
      %1101 = vmatprep.mubr.bf16.mxu0 0
      %1102 = vmatmul.mubr.bf16.gmra.mrb[0].mxu0 %v1058
      %v1103 = vpop.f32.mrb[0].mxu0
      %v1104 = vadd.f32 0.0, %v1103
      %v1105 = vpop.f32.mrb[0].mxu0
      %v1106 = vadd.f32 0.0, %v1105
      %v1107 = vpop.f32.mrb[0].mxu0
      %v1108 = vpop.f32.mrb[0].mxu0
      %1109 = vdwg.mxu0
      %1110 = vmatprep.subr.bf16.mxu0 0
      %1111 = vmatpush1.bf16.msra.mxu0 %v1067
      %1112 = vmatprep.subr.bf16.mxu0 0
      %1113 = vmatpush1.bf16.msra.mxu0 0
      %1114 = vmatprep.subr.bf16.mxu0 0
      %1115 = vmatpush1.bf16.msra.mxu0 0
      %1116 = vmatprep.subr.bf16.mxu0 0
      %1117 = vmatpush1.bf16.msra.mxu0 0
      %1118 = vmatprep.subr.bf16.mxu0 0
      %1119 = vmatpush1.bf16.msra.mxu0 0
      %1120 = vmatprep.subr.bf16.mxu0 0
      %1121 = vmatpush1.bf16.msra.mxu0 0
      %1122 = vmatprep.subr.bf16.mxu0 0
      %1123 = vmatpush1.bf16.msra.mxu0 0
      %1124 = vmatprep.subr.bf16.mxu0 0
      %1125 = vmatpush1.bf16.msra.mxu0 0
      %1126 = vmatprep.subr.bf16.mxu0 0
      %1127 = vmatpush1.bf16.msra.mxu0 0
      %1128 = vmatprep.subr.bf16.mxu0 0
      %1129 = vmatpush1.bf16.msra.mxu0 0
      %1130 = vmatprep.subr.bf16.mxu0 0
      %1131 = vmatpush1.bf16.msra.mxu0 0
      %1132 = vmatprep.subr.bf16.mxu0 0
      %1133 = vmatpush1.bf16.msra.mxu0 0
      %1134 = vmatprep.subr.bf16.mxu0 0
      %1135 = vmatpush1.bf16.msra.mxu0 0
      %1136 = vmatprep.subr.bf16.mxu0 0
      %1137 = vmatpush1.bf16.msra.mxu0 0
      %1138 = vmatprep.subr.bf16.mxu0 0
      %1139 = vmatpush1.bf16.msra.mxu0 0
      %1140 = vmatprep.subr.bf16.mxu0 0
      %1141 = vmatpush1.bf16.msra.mxu0 0
      %1142 = vmatprep.mubr.bf16.mxu0 0
      %1143 = vmatmul.mubr.bf16.gmra.mrb[0].mxu0 %v1058
      %v1144 = vpop.f32.mrb[0].mxu0
      %v1145 = vadd.f32 0.0, %v1144
      %v1146 = vpop.f32.mrb[0].mxu0
      %v1147 = vpop.f32.mrb[0].mxu0
      %v1148 = vpop.f32.mrb[0].mxu0
      %1149 = vdwg.mxu0
      %v1150 = vadd.f32 %v1025, %v1104
      %v1151 = vadd.f32 %v1026, %v1106
      %v1152 = vadd.f32 %v1027, %v1145
      %s1153 = scalar_lea.vmem %s1, 14
      %v1154 = vld [vmem:[%s1153] sm:$0x3]
      %v1155 = vld [vmem:[#allocation2] sm:$0x3f]
      %v1157 = vcombine.high %v1155, %v1155
      %v1159 = vunpack.c.l.s4 1983009808
      %v1160 = vunpack.c.0.s8 %v1159
      %v1161 = vlaneseq
      %v1162 = vshrl.u32 %v1161, 7
      %v1163 = vsub.s32 %v1160, %v1162
      %v1164 = vrot.slane %v1155, %v1163
      %v1166 = vunpack.c.l.s4 1983009808
      %v1167 = vunpack.c.0.s8 %v1166
      %v1168 = vlaneseq
      %v1169 = vshrl.u32 %v1168, 7
      %v1170 = vsub.s32 %v1167, %v1169
      %v1171 = vrot.slane %v1157, %v1170
      %v1172 = vcombine.high %v1164, %v1164
      %1173 = vrot.lane.b32.xlu0 %v1164, 91
      %v1174 = vpop.permute.xlu0 %1173
      %1175 = vrot.lane.b32.xlu0 %v1172, 91
      %v1176 = vpop.permute.xlu0 %1175
      %1177 = vrot.lane.b32.xlu0 %v1171, 91
      %v1178 = vpop.permute.xlu0 %1177
      %vm1179 = vcmask 744448
      %v1180 = vsel %vm1179, %v1174, %v1176
      %v1181 = vsel %vm1179, %v1176, %v1178
      %v1183 = vsel %vm340, %v1154, 0
      %v1186 = vsel %vm344, %v1180, 0
      %v1189 = vsel %vm344, %v1181, 0
      %v1192 = vsel %vm344, %v1178, 0
      %1194 = vmatprep.subr.bf16.mxu0 %v1189
      %1195 = vmatpush1.bf16.msra.mxu0 %v1186
      %1196 = vmatprep.subr.bf16.mxu0 0
      %1197 = vmatpush1.bf16.msra.mxu0 0
      %1198 = vmatprep.subr.bf16.mxu0 0
      %1199 = vmatpush1.bf16.msra.mxu0 0
      %1200 = vmatprep.subr.bf16.mxu0 0
      %1201 = vmatpush1.bf16.msra.mxu0 0
      %1202 = vmatprep.subr.bf16.mxu0 0
      %1203 = vmatpush1.bf16.msra.mxu0 0
      %1204 = vmatprep.subr.bf16.mxu0 0
      %1205 = vmatpush1.bf16.msra.mxu0 0
      %1206 = vmatprep.subr.bf16.mxu0 0
      %1207 = vmatpush1.bf16.msra.mxu0 0
      %1208 = vmatprep.subr.bf16.mxu0 0
      %1209 = vmatpush1.bf16.msra.mxu0 0
      %1210 = vmatprep.subr.bf16.mxu0 0
      %1211 = vmatpush1.bf16.msra.mxu0 0
      %1212 = vmatprep.subr.bf16.mxu0 0
      %1213 = vmatpush1.bf16.msra.mxu0 0
      %1214 = vmatprep.subr.bf16.mxu0 0
      %1215 = vmatpush1.bf16.msra.mxu0 0
      %1216 = vmatprep.subr.bf16.mxu0 0
      %1217 = vmatpush1.bf16.msra.mxu0 0
      %1218 = vmatprep.subr.bf16.mxu0 0
      %1219 = vmatpush1.bf16.msra.mxu0 0
      %1220 = vmatprep.subr.bf16.mxu0 0
      %1221 = vmatpush1.bf16.msra.mxu0 0
      %1222 = vmatprep.subr.bf16.mxu0 0
      %1223 = vmatpush1.bf16.msra.mxu0 0
      %1224 = vmatprep.subr.bf16.mxu0 0
      %1225 = vmatpush1.bf16.msra.mxu0 0
      %1226 = vmatprep.mubr.bf16.mxu0 0
      %1227 = vmatmul.mubr.bf16.gmra.mrb[0].mxu0 %v1183
      %v1228 = vpop.f32.mrb[0].mxu0
      %v1229 = vadd.f32 0.0, %v1228
      %v1230 = vpop.f32.mrb[0].mxu0
      %v1231 = vadd.f32 0.0, %v1230
      %v1232 = vpop.f32.mrb[0].mxu0
      %v1233 = vpop.f32.mrb[0].mxu0
      %1234 = vdwg.mxu0
      %1235 = vmatprep.subr.bf16.mxu0 0
      %1236 = vmatpush1.bf16.msra.mxu0 %v1192
      %1237 = vmatprep.subr.bf16.mxu0 0
      %1238 = vmatpush1.bf16.msra.mxu0 0
      %1239 = vmatprep.subr.bf16.mxu0 0
      %1240 = vmatpush1.bf16.msra.mxu0 0
      %1241 = vmatprep.subr.bf16.mxu0 0
      %1242 = vmatpush1.bf16.msra.mxu0 0
      %1243 = vmatprep.subr.bf16.mxu0 0
      %1244 = vmatpush1.bf16.msra.mxu0 0
      %1245 = vmatprep.subr.bf16.mxu0 0
      %1246 = vmatpush1.bf16.msra.mxu0 0
      %1247 = vmatprep.subr.bf16.mxu0 0
      %1248 = vmatpush1.bf16.msra.mxu0 0
      %1249 = vmatprep.subr.bf16.mxu0 0
      %1250 = vmatpush1.bf16.msra.mxu0 0
      %1251 = vmatprep.subr.bf16.mxu0 0
      %1252 = vmatpush1.bf16.msra.mxu0 0
      %1253 = vmatprep.subr.bf16.mxu0 0
      %1254 = vmatpush1.bf16.msra.mxu0 0
      %1255 = vmatprep.subr.bf16.mxu0 0
      %1256 = vmatpush1.bf16.msra.mxu0 0
      %1257 = vmatprep.subr.bf16.mxu0 0
      %1258 = vmatpush1.bf16.msra.mxu0 0
      %1259 = vmatprep.subr.bf16.mxu0 0
      %1260 = vmatpush1.bf16.msra.mxu0 0
      %1261 = vmatprep.subr.bf16.mxu0 0
      %1262 = vmatpush1.bf16.msra.mxu0 0
      %1263 = vmatprep.subr.bf16.mxu0 0
      %1264 = vmatpush1.bf16.msra.mxu0 0
      %1265 = vmatprep.subr.bf16.mxu0 0
      %1266 = vmatpush1.bf16.msra.mxu0 0
      %1267 = vmatprep.mubr.bf16.mxu0 0
      %1268 = vmatmul.mubr.bf16.gmra.mrb[0].mxu0 %v1183
      %v1269 = vpop.f32.mrb[0].mxu0
      %v1270 = vadd.f32 0.0, %v1269
      %v1271 = vpop.f32.mrb[0].mxu0
      %v1272 = vpop.f32.mrb[0].mxu0
      %v1273 = vpop.f32.mrb[0].mxu0
      %1274 = vdwg.mxu0
      %v1275 = vadd.f32 %v1150, %v1229
      %v1276 = vadd.f32 %v1151, %v1231
      %v1277 = vadd.f32 %v1152, %v1270
      %s1278 = scalar_lea.vmem %s1, 16
      %v1279 = vld [vmem:[%s1278] sm:$0x3]
      %v1280 = vld [vmem:[#allocation2] sm:$0x3f]
      %v1282 = vcombine.high %v1280, %v1280
      %v1284 = vunpack.c.l.s4 1983009808
      %v1285 = vunpack.c.0.s8 %v1284
      %v1286 = vlaneseq
      %v1287 = vshrl.u32 %v1286, 7
      %v1288 = vsub.s32 %v1285, %v1287
      %v1289 = vrot.slane %v1280, %v1288
      %v1291 = vunpack.c.l.s4 1983009808
      %v1292 = vunpack.c.0.s8 %v1291
      %v1293 = vlaneseq
      %v1294 = vshrl.u32 %v1293, 7
      %v1295 = vsub.s32 %v1292, %v1294
      %v1296 = vrot.slane %v1282, %v1295
      %v1297 = vcombine.high %v1289, %v1289
      %1298 = vrot.lane.b32.xlu0 %v1289, 90
      %v1299 = vpop.permute.xlu0 %1298
      %1300 = vrot.lane.b32.xlu0 %v1297, 90
      %v1301 = vpop.permute.xlu0 %1300
      %1302 = vrot.lane.b32.xlu0 %v1296, 90
      %v1303 = vpop.permute.xlu0 %1302
      %vm1304 = vcmask 736256
      %v1305 = vsel %vm1304, %v1299, %v1301
      %v1306 = vsel %vm1304, %v1301, %v1303
      %v1308 = vsel %vm340, %v1279, 0
      %v1311 = vsel %vm344, %v1305, 0
      %v1314 = vsel %vm344, %v1306, 0
      %v1317 = vsel %vm344, %v1303, 0
      %1319 = vmatprep.subr.bf16.mxu0 %v1314
      %1320 = vmatpush1.bf16.msra.mxu0 %v1311
      %1321 = vmatprep.subr.bf16.mxu0 0
      %1322 = vmatpush1.bf16.msra.mxu0 0
      %1323 = vmatprep.subr.bf16.mxu0 0
      %1324 = vmatpush1.bf16.msra.mxu0 0
      %1325 = vmatprep.subr.bf16.mxu0 0
      %1326 = vmatpush1.bf16.msra.mxu0 0
      %1327 = vmatprep.subr.bf16.mxu0 0
      %1328 = vmatpush1.bf16.msra.mxu0 0
      %1329 = vmatprep.subr.bf16.mxu0 0
      %1330 = vmatpush1.bf16.msra.mxu0 0
      %1331 = vmatprep.subr.bf16.mxu0 0
      %1332 = vmatpush1.bf16.msra.mxu0 0
      %1333 = vmatprep.subr.bf16.mxu0 0
      %1334 = vmatpush1.bf16.msra.mxu0 0
      %1335 = vmatprep.subr.bf16.mxu0 0
      %1336 = vmatpush1.bf16.msra.mxu0 0
      %1337 = vmatprep.subr.bf16.mxu0 0
      %1338 = vmatpush1.bf16.msra.mxu0 0
      %1339 = vmatprep.subr.bf16.mxu0 0
      %1340 = vmatpush1.bf16.msra.mxu0 0
      %1341 = vmatprep.subr.bf16.mxu0 0
      %1342 = vmatpush1.bf16.msra.mxu0 0
      %1343 = vmatprep.subr.bf16.mxu0 0
      %1344 = vmatpush1.bf16.msra.mxu0 0
      %1345 = vmatprep.subr.bf16.mxu0 0
      %1346 = vmatpush1.bf16.msra.mxu0 0
      %1347 = vmatprep.subr.bf16.mxu0 0
      %1348 = vmatpush1.bf16.msra.mxu0 0
      %1349 = vmatprep.subr.bf16.mxu0 0
      %1350 = vmatpush1.bf16.msra.mxu0 0
      %1351 = vmatprep.mubr.bf16.mxu0 0
      %1352 = vmatmul.mubr.bf16.gmra.mrb[0].mxu0 %v1308
      %v1353 = vpop.f32.mrb[0].mxu0
      %v1354 = vadd.f32 0.0, %v1353
      %v1355 = vpop.f32.mrb[0].mxu0
      %v1356 = vadd.f32 0.0, %v1355
      %v1357 = vpop.f32.mrb[0].mxu0
      %v1358 = vpop.f32.mrb[0].mxu0
      %1359 = vdwg.mxu0
      %1360 = vmatprep.subr.bf16.mxu0 0
      %1361 = vmatpush1.bf16.msra.mxu0 %v1317
      %1362 = vmatprep.subr.bf16.mxu0 0
      %1363 = vmatpush1.bf16.msra.mxu0 0
      %1364 = vmatprep.subr.bf16.mxu0 0
      %1365 = vmatpush1.bf16.msra.mxu0 0
      %1366 = vmatprep.subr.bf16.mxu0 0
      %1367 = vmatpush1.bf16.msra.mxu0 0
      %1368 = vmatprep.subr.bf16.mxu0 0
      %1369 = vmatpush1.bf16.msra.mxu0 0
      %1370 = vmatprep.subr.bf16.mxu0 0
      %1371 = vmatpush1.bf16.msra.mxu0 0
      %1372 = vmatprep.subr.bf16.mxu0 0
      %1373 = vmatpush1.bf16.msra.mxu0 0
      %1374 = vmatprep.subr.bf16.mxu0 0
      %1375 = vmatpush1.bf16.msra.mxu0 0
      %1376 = vmatprep.subr.bf16.mxu0 0
      %1377 = vmatpush1.bf16.msra.mxu0 0
      %1378 = vmatprep.subr.bf16.mxu0 0
      %1379 = vmatpush1.bf16.msra.mxu0 0
      %1380 = vmatprep.subr.bf16.mxu0 0
      %1381 = vmatpush1.bf16.msra.mxu0 0
      %1382 = vmatprep.subr.bf16.mxu0 0
      %1383 = vmatpush1.bf16.msra.mxu0 0
      %1384 = vmatprep.subr.bf16.mxu0 0
      %1385 = vmatpush1.bf16.msra.mxu0 0
      %1386 = vmatprep.subr.bf16.mxu0 0
      %1387 = vmatpush1.bf16.msra.mxu0 0
      %1388 = vmatprep.subr.bf16.mxu0 0
      %1389 = vmatpush1.bf16.msra.mxu0 0
      %1390 = vmatprep.subr.bf16.mxu0 0
      %1391 = vmatpush1.bf16.msra.mxu0 0
      %1392 = vmatprep.mubr.bf16.mxu0 0
      %1393 = vmatmul.mubr.bf16.gmra.mrb[0].mxu0 %v1308
      %v1394 = vpop.f32.mrb[0].mxu0
      %v1395 = vadd.f32 0.0, %v1394
      %v1396 = vpop.f32.mrb[0].mxu0
      %v1397 = vpop.f32.mrb[0].mxu0
      %v1398 = vpop.f32.mrb[0].mxu0
      %1399 = vdwg.mxu0
      %v1400 = vadd.f32 %v1275, %v1354
      %v1401 = vadd.f32 %v1276, %v1356
      %v1402 = vadd.f32 %v1277, %v1395
      %v1403 = vsel %vm230, 1, 0
      %v1404 = vsel %vm231, 1, 0
      %v1405 = vsel %vm232, 1, 0
      %vm1406 = vcmp.eq.s32.totalorder %v1403, 1
      %vm1407 = vcmp.eq.s32.totalorder %v1404, 1
      %vm1408 = vcmp.eq.s32.totalorder %v1405, 1
      %v1409 = vsel %vm1406, %v1400, 0.0
      %v1410 = vsel %vm1407, %v1401, 0.0
      %v1411 = vsel %vm1408, %v1402, 0.0
      %vm1412 = vcmask 1043456
      %v1413 = vsel %vm1412, %v1409, 0.0
      %v1414 = vsel %vm1412, %v1410, 0.0
      %v1415 = vadd.f32 %v1413, %v1414
      %vm1416 = vcmask 257024
      %v1417 = vsel %vm1416, %v1411, 0.0
      %v1418 = vadd.f32 %v1415, %v1417
      %1419 = vadd.xlane.f32.xlu0 %v1418
      %v1420 = vpop.xlane.xlu0 %1419
      %v1421 = vmul.f32 %v1420, 0.00390625
      %v1422 = vmul.f32 %v1409, %v1409
      %v1423 = vmul.f32 %v1410, %v1410
      %v1424 = vmul.f32 %v1411, %v1411
      %v1425 = vsel %vm1412, %v1422, 0.0
      %v1426 = vsel %vm1412, %v1423, 0.0
      %v1427 = vadd.f32 %v1425, %v1426
      %v1428 = vsel %vm1416, %v1424, 0.0
      %v1429 = vadd.f32 %v1427, %v1428
      %1430 = vadd.xlane.f32.xlu0 %v1429
      %v1431 = vpop.xlane.xlu0 %1430
      %v1432 = vmul.f32 %v1431, 0.00390625
      %v1433 = vmul.f32 %v1421, %v1421
      %v1434 = vsub.f32 %v1432, %v1433
      %v1435 = vmax.f32 %v1434, 0.0
      %v1436 = vsub.f32 %v1400, %v1421
      %v1437 = vsub.f32 %v1401, %v1421
      %v1438 = vsub.f32 %v1402, %v1421
      %v1439 = vadd.f32 %v1435, 1e-05
      %v1440 = vrsqrt.pop %v1439
      %v1441 = vmul.f32 %v1436, %v1440
      %v1442 = vmul.f32 %v1437, %v1440
      %v1443 = vmul.f32 %v1438, %v1440
      %v1444 = vmax.f32 %v1441, 0.0
      %v1445 = vmax.f32 %v1442, 0.0
      %v1446 = vmax.f32 %v1443, 0.0
      %1450 = vrot.lane.b32.xlu0 %v1444, 126
      %v1451 = vpop.permute.xlu0 %1450
      %1452 = vrot.lane.b32.xlu0 %v1445, 126
      %v1453 = vpop.permute.xlu0 %1452
      %1454 = vrot.lane.b32.xlu0 %v1446, 126
      %v1455 = vpop.permute.xlu0 %1454
      %vm1456 = vcmask 1031168
      %v1457 = vsel %vm1456, %v1451, %v1453
      %v1458 = vsel %vm1456, %v1453, %v1455
      %1462 = vrot.lane.b32.xlu0 %v1444, 30
      %v1463 = vpop.permute.xlu0 %1462
      %vm1465 = vcmask 244736
      %v1466 = vsel %vm1465, %v1455, %v1463
      %1467 = vrot.lane.b32.xlu0 %v1446, 98
      %v1468 = vpop.permute.xlu0 %1467
      %1470 = vrot.lane.b32.xlu0 %v1444, 2
      %v1471 = vpop.permute.xlu0 %1470
      %1472 = vrot.lane.b32.xlu0 %v1445, 2
      %v1473 = vpop.permute.xlu0 %1472
      %1474 = vrot.lane.b32.xlu0 %v1446, 2
      %v1475 = vpop.permute.xlu0 %1474
      %vm1476 = vcmask 15360
      %v1477 = vsel %vm1476, %v1471, %v1473
      %v1478 = vsel %vm1476, %v1473, %v1475
      %v1482 = vsel %vm1476, %v1468, %v1471
      %v1483 = vsel %vm236, 1, 0
      %v1484 = vsel %vm237, 1, 0
      %v1485 = vsel %vm238, 1, 0
      %vm1486 = vcmp.eq.s32.totalorder %v1483, 1
      %vm1487 = vcmp.eq.s32.totalorder %v1484, 1
      %vm1488 = vcmp.eq.s32.totalorder %v1485, 1
      %v1489 = vsel %vm1486, %v1482, %v1444
      %v1490 = vsel %vm1487, %v1477, %v1445
      %v1491 = vsel %vm1488, %v1478, %v1446
      %v1492 = vsel %vm233, 1, 0
      %v1493 = vsel %vm234, 1, 0
      %v1494 = vsel %vm235, 1, 0
      %vm1495 = vcmp.eq.s32.totalorder %v1492, 1
      %vm1496 = vcmp.eq.s32.totalorder %v1493, 1
      %vm1497 = vcmp.eq.s32.totalorder %v1494, 1
      %v1498 = vsel %vm1495, %v1457, %v1489
      %v1499 = vsel %vm1496, %v1458, %v1490
      %v1500 = vsel %vm1497, %v1466, %v1491
      %v1501 = vpack.c.bf16 %v1498, %v1498
      %v1502 = vpack.c.bf16 %v1499, %v1499
      %v1503 = vpack.c.bf16 %v1500, %v1500
      %v1506 = vunpack.c.l.s4 1983009808
      %v1507 = vunpack.c.0.s8 %v1506
      %v1508 = vlaneseq
      %v1509 = vshrl.u32 %v1508, 7
      %v1510 = vsub.s32 %v1507, %v1509
      %v1511 = vrot.slane %v1501, %v1510
      %1512 = vrot.lane.b32.xlu0 %v1511, 111
      %v1513 = vpop.permute.xlu0 %1512
      %1515 = vst.msk [vmem:[#allocation2] sm:$0x3] %vm262, %v1513
      %v1518 = vcombine.low %v1501, %v1502
      %v1520 = vunpack.c.l.s4 1983009808
      %v1521 = vunpack.c.0.s8 %v1520
      %v1522 = vlaneseq
      %v1523 = vshrl.u32 %v1522, 7
      %v1524 = vsub.s32 %v1521, %v1523
      %v1525 = vrot.slane %v1518, %v1524
      %v1527 = vunpack.c.l.s4 1983009808
      %v1528 = vunpack.c.0.s8 %v1527
      %v1529 = vlaneseq
      %v1530 = vshrl.u32 %v1529, 7
      %v1531 = vsub.s32 %v1528, %v1530
      %v1532 = vrot.slane %v1503, %v1531
      %v1533 = vcombine.low %v1525, %v1532
      %1534 = vrot.lane.b32.xlu0 %v1533, 19
      %v1535 = vpop.permute.xlu0 %1534
      %v1536 = vrot.slane %v1535, 6
      %v1537 = vsel %vm285, %v1536, %v1535
      %1539 = vst.msk [vmem:[#allocation2] sm:$0x3f] %vm292, %v1537
      %v1540 = vcombine.low %v1502, %v1503
      %v1542 = vunpack.c.l.s4 1983009808
      %v1543 = vunpack.c.0.s8 %v1542
      %v1544 = vlaneseq
      %v1545 = vshrl.u32 %v1544, 7
      %v1546 = vsub.s32 %v1543, %v1545
      %v1547 = vrot.slane %v1540, %v1546
      %1548 = vrot.lane.b32.xlu0 %v1547, 55
      %v1549 = vpop.permute.xlu0 %1548
      %v1550 = vrot.slane %v1549, 2
      %v1551 = vsel %vm305, %v1549, %v1550
      %1553 = vst.msk [vmem:[#allocation2 + $0x4] sm:$0x3] %vm308, %v1551
      %v1554 = vld [vmem:[%s2] sm:$0x3]
      %v1555 = vld [vmem:[#allocation2] sm:$0x3f]
      %s1556 = scalar_lea.vmem %s2, 2
      %v1557 = vld [vmem:[%s1556] sm:$0x3]
      %v1559 = vcombine.high %v1555, %v1555
      %v1561 = vunpack.c.l.s4 1983009808
      %v1562 = vunpack.c.0.s8 %v1561
      %v1563 = vlaneseq
      %v1564 = vshrl.u32 %v1563, 7
      %v1565 = vsub.s32 %v1562, %v1564
      %v1566 = vrot.slane %v1555, %v1565
      %v1568 = vunpack.c.l.s4 1983009808
      %v1569 = vunpack.c.0.s8 %v1568
      %v1570 = vlaneseq
      %v1571 = vshrl.u32 %v1570, 7
      %v1572 = vsub.s32 %v1569, %v1571
      %v1573 = vrot.slane %v1559, %v1572
      %v1574 = vcombine.high %v1566, %v1566
      %1575 = vrot.lane.b32.xlu0 %v1566, 127
      %v1576 = vpop.permute.xlu0 %1575
      %1577 = vrot.lane.b32.xlu0 %v1574, 127
      %v1578 = vpop.permute.xlu0 %1577
      %1579 = vrot.lane.b32.xlu0 %v1573, 127
      %v1580 = vpop.permute.xlu0 %1579
      %v1581 = vsel %vm337, %v1576, %v1578
      %v1582 = vsel %vm337, %v1578, %v1580
      %v1584 = vsel %vm340, %v1557, 0
      %v1587 = vsel %vm344, %v1581, 0
      %v1590 = vsel %vm344, %v1582, 0
      %v1593 = vsel %vm344, %v1580, 0
      %1595 = vmatprep.subr.bf16.mxu0 %v1590
      %1596 = vmatpush1.bf16.msra.mxu0 %v1587
      %1597 = vmatprep.subr.bf16.mxu0 0
      %1598 = vmatpush1.bf16.msra.mxu0 0
      %1599 = vmatprep.subr.bf16.mxu0 0
      %1600 = vmatpush1.bf16.msra.mxu0 0
      %1601 = vmatprep.subr.bf16.mxu0 0
      %1602 = vmatpush1.bf16.msra.mxu0 0
      %1603 = vmatprep.subr.bf16.mxu0 0
      %1604 = vmatpush1.bf16.msra.mxu0 0
      %1605 = vmatprep.subr.bf16.mxu0 0
      %1606 = vmatpush1.bf16.msra.mxu0 0
      %1607 = vmatprep.subr.bf16.mxu0 0
      %1608 = vmatpush1.bf16.msra.mxu0 0
      %1609 = vmatprep.subr.bf16.mxu0 0
      %1610 = vmatpush1.bf16.msra.mxu0 0
      %1611 = vmatprep.subr.bf16.mxu0 0
      %1612 = vmatpush1.bf16.msra.mxu0 0
      %1613 = vmatprep.subr.bf16.mxu0 0
      %1614 = vmatpush1.bf16.msra.mxu0 0
      %1615 = vmatprep.subr.bf16.mxu0 0
      %1616 = vmatpush1.bf16.msra.mxu0 0
      %1617 = vmatprep.subr.bf16.mxu0 0
      %1618 = vmatpush1.bf16.msra.mxu0 0
      %1619 = vmatprep.subr.bf16.mxu0 0
      %1620 = vmatpush1.bf16.msra.mxu0 0
      %1621 = vmatprep.subr.bf16.mxu0 0
      %1622 = vmatpush1.bf16.msra.mxu0 0
      %1623 = vmatprep.subr.bf16.mxu0 0
      %1624 = vmatpush1.bf16.msra.mxu0 0
      %1625 = vmatprep.subr.bf16.mxu0 0
      %1626 = vmatpush1.bf16.msra.mxu0 0
      %1627 = vmatprep.mubr.bf16.mxu0 0
      %1628 = vmatmul.mubr.bf16.gmra.mrb[0].mxu0 %v1584
      %v1629 = vpop.f32.mrb[0].mxu0
      %v1630 = vadd.f32 0.0, %v1629
      %v1631 = vpop.f32.mrb[0].mxu0
      %v1632 = vadd.f32 0.0, %v1631
      %v1633 = vpop.f32.mrb[0].mxu0
      %v1634 = vpop.f32.mrb[0].mxu0
      %1635 = vdwg.mxu0
      %1636 = vmatprep.subr.bf16.mxu0 0
      %1637 = vmatpush1.bf16.msra.mxu0 %v1593
      %1638 = vmatprep.subr.bf16.mxu0 0
      %1639 = vmatpush1.bf16.msra.mxu0 0
      %1640 = vmatprep.subr.bf16.mxu0 0
      %1641 = vmatpush1.bf16.msra.mxu0 0
      %1642 = vmatprep.subr.bf16.mxu0 0
      %1643 = vmatpush1.bf16.msra.mxu0 0
      %1644 = vmatprep.subr.bf16.mxu0 0
      %1645 = vmatpush1.bf16.msra.mxu0 0
      %1646 = vmatprep.subr.bf16.mxu0 0
      %1647 = vmatpush1.bf16.msra.mxu0 0
      %1648 = vmatprep.subr.bf16.mxu0 0
      %1649 = vmatpush1.bf16.msra.mxu0 0
      %1650 = vmatprep.subr.bf16.mxu0 0
      %1651 = vmatpush1.bf16.msra.mxu0 0
      %1652 = vmatprep.subr.bf16.mxu0 0
      %1653 = vmatpush1.bf16.msra.mxu0 0
      %1654 = vmatprep.subr.bf16.mxu0 0
      %1655 = vmatpush1.bf16.msra.mxu0 0
      %1656 = vmatprep.subr.bf16.mxu0 0
      %1657 = vmatpush1.bf16.msra.mxu0 0
      %1658 = vmatprep.subr.bf16.mxu0 0
      %1659 = vmatpush1.bf16.msra.mxu0 0
      %1660 = vmatprep.subr.bf16.mxu0 0
      %1661 = vmatpush1.bf16.msra.mxu0 0
      %1662 = vmatprep.subr.bf16.mxu0 0
      %1663 = vmatpush1.bf16.msra.mxu0 0
      %1664 = vmatprep.subr.bf16.mxu0 0
      %1665 = vmatpush1.bf16.msra.mxu0 0
      %1666 = vmatprep.subr.bf16.mxu0 0
      %1667 = vmatpush1.bf16.msra.mxu0 0
      %1668 = vmatprep.mubr.bf16.mxu0 0
      %1669 = vmatmul.mubr.bf16.gmra.mrb[0].mxu0 %v1584
      %v1670 = vpop.f32.mrb[0].mxu0
      %v1671 = vadd.f32 0.0, %v1670
      %v1672 = vpop.f32.mrb[0].mxu0
      %v1673 = vpop.f32.mrb[0].mxu0
      %v1674 = vpop.f32.mrb[0].mxu0
      %1675 = vdwg.mxu0
      %v1677 = vsel %vm340, %v1554, 0
      %v1680 = vsel %vm344, %v1566, 0
      %v1683 = vsel %vm344, %v1574, 0
      %v1686 = vsel %vm344, %v1573, 0
      %1688 = vmatprep.subr.bf16.mxu0 %v1683
      %1689 = vmatpush1.bf16.msra.mxu0 %v1680
      %1690 = vmatprep.subr.bf16.mxu0 0
      %1691 = vmatpush1.bf16.msra.mxu0 0
      %1692 = vmatprep.subr.bf16.mxu0 0
      %1693 = vmatpush1.bf16.msra.mxu0 0
      %1694 = vmatprep.subr.bf16.mxu0 0
      %1695 = vmatpush1.bf16.msra.mxu0 0
      %1696 = vmatprep.subr.bf16.mxu0 0
      %1697 = vmatpush1.bf16.msra.mxu0 0
      %1698 = vmatprep.subr.bf16.mxu0 0
      %1699 = vmatpush1.bf16.msra.mxu0 0
      %1700 = vmatprep.subr.bf16.mxu0 0
      %1701 = vmatpush1.bf16.msra.mxu0 0
      %1702 = vmatprep.subr.bf16.mxu0 0
      %1703 = vmatpush1.bf16.msra.mxu0 0
      %1704 = vmatprep.subr.bf16.mxu0 0
      %1705 = vmatpush1.bf16.msra.mxu0 0
      %1706 = vmatprep.subr.bf16.mxu0 0
      %1707 = vmatpush1.bf16.msra.mxu0 0
      %1708 = vmatprep.subr.bf16.mxu0 0
      %1709 = vmatpush1.bf16.msra.mxu0 0
      %1710 = vmatprep.subr.bf16.mxu0 0
      %1711 = vmatpush1.bf16.msra.mxu0 0
      %1712 = vmatprep.subr.bf16.mxu0 0
      %1713 = vmatpush1.bf16.msra.mxu0 0
      %1714 = vmatprep.subr.bf16.mxu0 0
      %1715 = vmatpush1.bf16.msra.mxu0 0
      %1716 = vmatprep.subr.bf16.mxu0 0
      %1717 = vmatpush1.bf16.msra.mxu0 0
      %1718 = vmatprep.subr.bf16.mxu0 0
      %1719 = vmatpush1.bf16.msra.mxu0 0
      %1720 = vmatprep.mubr.bf16.mxu0 0
      %1721 = vmatmul.mubr.bf16.gmra.mrb[0].mxu0 %v1677
      %v1722 = vpop.f32.mrb[0].mxu0
      %v1723 = vadd.f32 %v1630, %v1722
      %v1724 = vpop.f32.mrb[0].mxu0
      %v1725 = vadd.f32 %v1632, %v1724
      %v1726 = vpop.f32.mrb[0].mxu0
      %v1727 = vpop.f32.mrb[0].mxu0
      %1728 = vdwg.mxu0
      %1729 = vmatprep.subr.bf16.mxu0 0
      %1730 = vmatpush1.bf16.msra.mxu0 %v1686
      %1731 = vmatprep.subr.bf16.mxu0 0
      %1732 = vmatpush1.bf16.msra.mxu0 0
      %1733 = vmatprep.subr.bf16.mxu0 0
      %1734 = vmatpush1.bf16.msra.mxu0 0
      %1735 = vmatprep.subr.bf16.mxu0 0
      %1736 = vmatpush1.bf16.msra.mxu0 0
      %1737 = vmatprep.subr.bf16.mxu0 0
      %1738 = vmatpush1.bf16.msra.mxu0 0
      %1739 = vmatprep.subr.bf16.mxu0 0
      %1740 = vmatpush1.bf16.msra.mxu0 0
      %1741 = vmatprep.subr.bf16.mxu0 0
      %1742 = vmatpush1.bf16.msra.mxu0 0
      %1743 = vmatprep.subr.bf16.mxu0 0
      %1744 = vmatpush1.bf16.msra.mxu0 0
      %1745 = vmatprep.subr.bf16.mxu0 0
      %1746 = vmatpush1.bf16.msra.mxu0 0
      %1747 = vmatprep.subr.bf16.mxu0 0
      %1748 = vmatpush1.bf16.msra.mxu0 0
      %1749 = vmatprep.subr.bf16.mxu0 0
      %1750 = vmatpush1.bf16.msra.mxu0 0
      %1751 = vmatprep.subr.bf16.mxu0 0
      %1752 = vmatpush1.bf16.msra.mxu0 0
      %1753 = vmatprep.subr.bf16.mxu0 0
      %1754 = vmatpush1.bf16.msra.mxu0 0
      %1755 = vmatprep.subr.bf16.mxu0 0
      %1756 = vmatpush1.bf16.msra.mxu0 0
      %1757 = vmatprep.subr.bf16.mxu0 0
      %1758 = vmatpush1.bf16.msra.mxu0 0
      %1759 = vmatprep.subr.bf16.mxu0 0
      %1760 = vmatpush1.bf16.msra.mxu0 0
      %1761 = vmatprep.mubr.bf16.mxu0 0
      %1762 = vmatmul.mubr.bf16.gmra.mrb[0].mxu0 %v1677
      %v1763 = vpop.f32.mrb[0].mxu0
      %v1764 = vadd.f32 %v1671, %v1763
      %v1765 = vpop.f32.mrb[0].mxu0
      %v1766 = vpop.f32.mrb[0].mxu0
      %v1767 = vpop.f32.mrb[0].mxu0
      %1768 = vdwg.mxu0
      %s1769 = scalar_lea.vmem %s2, 4
      %v1770 = vld [vmem:[%s1769] sm:$0x3]
      %v1771 = vld [vmem:[#allocation2] sm:$0x3f]
      %v1773 = vcombine.high %v1771, %v1771
      %v1775 = vunpack.c.l.s4 1983009808
      %v1776 = vunpack.c.0.s8 %v1775
      %v1777 = vlaneseq
      %v1778 = vshrl.u32 %v1777, 7
      %v1779 = vsub.s32 %v1776, %v1778
      %v1780 = vrot.slane %v1771, %v1779
      %v1782 = vunpack.c.l.s4 1983009808
      %v1783 = vunpack.c.0.s8 %v1782
      %v1784 = vlaneseq
      %v1785 = vshrl.u32 %v1784, 7
      %v1786 = vsub.s32 %v1783, %v1785
      %v1787 = vrot.slane %v1773, %v1786
      %v1788 = vcombine.high %v1780, %v1780
      %1789 = vrot.lane.b32.xlu0 %v1780, 126
      %v1790 = vpop.permute.xlu0 %1789
      %1791 = vrot.lane.b32.xlu0 %v1788, 126
      %v1792 = vpop.permute.xlu0 %1791
      %1793 = vrot.lane.b32.xlu0 %v1787, 126
      %v1794 = vpop.permute.xlu0 %1793
      %v1795 = vsel %vm554, %v1790, %v1792
      %v1796 = vsel %vm554, %v1792, %v1794
      %v1798 = vsel %vm340, %v1770, 0
      %v1801 = vsel %vm344, %v1795, 0
      %v1804 = vsel %vm344, %v1796, 0
      %v1807 = vsel %vm344, %v1794, 0
      %1809 = vmatprep.subr.bf16.mxu0 %v1804
      %1810 = vmatpush1.bf16.msra.mxu0 %v1801
      %1811 = vmatprep.subr.bf16.mxu0 0
      %1812 = vmatpush1.bf16.msra.mxu0 0
      %1813 = vmatprep.subr.bf16.mxu0 0
      %1814 = vmatpush1.bf16.msra.mxu0 0
      %1815 = vmatprep.subr.bf16.mxu0 0
      %1816 = vmatpush1.bf16.msra.mxu0 0
      %1817 = vmatprep.subr.bf16.mxu0 0
      %1818 = vmatpush1.bf16.msra.mxu0 0
      %1819 = vmatprep.subr.bf16.mxu0 0
      %1820 = vmatpush1.bf16.msra.mxu0 0
      %1821 = vmatprep.subr.bf16.mxu0 0
      %1822 = vmatpush1.bf16.msra.mxu0 0
      %1823 = vmatprep.subr.bf16.mxu0 0
      %1824 = vmatpush1.bf16.msra.mxu0 0
      %1825 = vmatprep.subr.bf16.mxu0 0
      %1826 = vmatpush1.bf16.msra.mxu0 0
      %1827 = vmatprep.subr.bf16.mxu0 0
      %1828 = vmatpush1.bf16.msra.mxu0 0
      %1829 = vmatprep.subr.bf16.mxu0 0
      %1830 = vmatpush1.bf16.msra.mxu0 0
      %1831 = vmatprep.subr.bf16.mxu0 0
      %1832 = vmatpush1.bf16.msra.mxu0 0
      %1833 = vmatprep.subr.bf16.mxu0 0
      %1834 = vmatpush1.bf16.msra.mxu0 0
      %1835 = vmatprep.subr.bf16.mxu0 0
      %1836 = vmatpush1.bf16.msra.mxu0 0
      %1837 = vmatprep.subr.bf16.mxu0 0
      %1838 = vmatpush1.bf16.msra.mxu0 0
      %1839 = vmatprep.subr.bf16.mxu0 0
      %1840 = vmatpush1.bf16.msra.mxu0 0
      %1841 = vmatprep.mubr.bf16.mxu0 0
      %1842 = vmatmul.mubr.bf16.gmra.mrb[0].mxu0 %v1798
      %v1843 = vpop.f32.mrb[0].mxu0
      %v1844 = vadd.f32 0.0, %v1843
      %v1845 = vpop.f32.mrb[0].mxu0
      %v1846 = vadd.f32 0.0, %v1845
      %v1847 = vpop.f32.mrb[0].mxu0
      %v1848 = vpop.f32.mrb[0].mxu0
      %1849 = vdwg.mxu0
      %1850 = vmatprep.subr.bf16.mxu0 0
      %1851 = vmatpush1.bf16.msra.mxu0 %v1807
      %1852 = vmatprep.subr.bf16.mxu0 0
      %1853 = vmatpush1.bf16.msra.mxu0 0
      %1854 = vmatprep.subr.bf16.mxu0 0
      %1855 = vmatpush1.bf16.msra.mxu0 0
      %1856 = vmatprep.subr.bf16.mxu0 0
      %1857 = vmatpush1.bf16.msra.mxu0 0
      %1858 = vmatprep.subr.bf16.mxu0 0
      %1859 = vmatpush1.bf16.msra.mxu0 0
      %1860 = vmatprep.subr.bf16.mxu0 0
      %1861 = vmatpush1.bf16.msra.mxu0 0
      %1862 = vmatprep.subr.bf16.mxu0 0
      %1863 = vmatpush1.bf16.msra.mxu0 0
      %1864 = vmatprep.subr.bf16.mxu0 0
      %1865 = vmatpush1.bf16.msra.mxu0 0
      %1866 = vmatprep.subr.bf16.mxu0 0
      %1867 = vmatpush1.bf16.msra.mxu0 0
      %1868 = vmatprep.subr.bf16.mxu0 0
      %1869 = vmatpush1.bf16.msra.mxu0 0
      %1870 = vmatprep.subr.bf16.mxu0 0
      %1871 = vmatpush1.bf16.msra.mxu0 0
      %1872 = vmatprep.subr.bf16.mxu0 0
      %1873 = vmatpush1.bf16.msra.mxu0 0
      %1874 = vmatprep.subr.bf16.mxu0 0
      %1875 = vmatpush1.bf16.msra.mxu0 0
      %1876 = vmatprep.subr.bf16.mxu0 0
      %1877 = vmatpush1.bf16.msra.mxu0 0
      %1878 = vmatprep.subr.bf16.mxu0 0
      %1879 = vmatpush1.bf16.msra.mxu0 0
      %1880 = vmatprep.subr.bf16.mxu0 0
      %1881 = vmatpush1.bf16.msra.mxu0 0
      %1882 = vmatprep.mubr.bf16.mxu0 0
      %1883 = vmatmul.mubr.bf16.gmra.mrb[0].mxu0 %v1798
      %v1884 = vpop.f32.mrb[0].mxu0
      %v1885 = vadd.f32 0.0, %v1884
      %v1886 = vpop.f32.mrb[0].mxu0
      %v1887 = vpop.f32.mrb[0].mxu0
      %v1888 = vpop.f32.mrb[0].mxu0
      %1889 = vdwg.mxu0
      %v1890 = vadd.f32 %v1723, %v1844
      %v1891 = vadd.f32 %v1725, %v1846
      %v1892 = vadd.f32 %v1764, %v1885
      %s1893 = scalar_lea.vmem %s2, 6
      %v1894 = vld [vmem:[%s1893] sm:$0x3]
      %v1895 = vld [vmem:[#allocation2] sm:$0x3f]
      %v1897 = vcombine.high %v1895, %v1895
      %v1899 = vunpack.c.l.s4 1983009808
      %v1900 = vunpack.c.0.s8 %v1899
      %v1901 = vlaneseq
      %v1902 = vshrl.u32 %v1901, 7
      %v1903 = vsub.s32 %v1900, %v1902
      %v1904 = vrot.slane %v1895, %v1903
      %v1906 = vunpack.c.l.s4 1983009808
      %v1907 = vunpack.c.0.s8 %v1906
      %v1908 = vlaneseq
      %v1909 = vshrl.u32 %v1908, 7
      %v1910 = vsub.s32 %v1907, %v1909
      %v1911 = vrot.slane %v1897, %v1910
      %v1912 = vcombine.high %v1904, %v1904
      %1913 = vrot.lane.b32.xlu0 %v1904, 110
      %v1914 = vpop.permute.xlu0 %1913
      %1915 = vrot.lane.b32.xlu0 %v1912, 110
      %v1916 = vpop.permute.xlu0 %1915
      %1917 = vrot.lane.b32.xlu0 %v1911, 110
      %v1918 = vpop.permute.xlu0 %1917
      %v1919 = vsel %vm679, %v1914, %v1916
      %v1920 = vsel %vm679, %v1916, %v1918
      %v1922 = vsel %vm340, %v1894, 0
      %v1925 = vsel %vm344, %v1919, 0
      %v1928 = vsel %vm344, %v1920, 0
      %v1931 = vsel %vm344, %v1918, 0
      %1933 = vmatprep.subr.bf16.mxu0 %v1928
      %1934 = vmatpush1.bf16.msra.mxu0 %v1925
      %1935 = vmatprep.subr.bf16.mxu0 0
      %1936 = vmatpush1.bf16.msra.mxu0 0
      %1937 = vmatprep.subr.bf16.mxu0 0
      %1938 = vmatpush1.bf16.msra.mxu0 0
      %1939 = vmatprep.subr.bf16.mxu0 0
      %1940 = vmatpush1.bf16.msra.mxu0 0
      %1941 = vmatprep.subr.bf16.mxu0 0
      %1942 = vmatpush1.bf16.msra.mxu0 0
      %1943 = vmatprep.subr.bf16.mxu0 0
      %1944 = vmatpush1.bf16.msra.mxu0 0
      %1945 = vmatprep.subr.bf16.mxu0 0
      %1946 = vmatpush1.bf16.msra.mxu0 0
      %1947 = vmatprep.subr.bf16.mxu0 0
      %1948 = vmatpush1.bf16.msra.mxu0 0
      %1949 = vmatprep.subr.bf16.mxu0 0
      %1950 = vmatpush1.bf16.msra.mxu0 0
      %1951 = vmatprep.subr.bf16.mxu0 0
      %1952 = vmatpush1.bf16.msra.mxu0 0
      %1953 = vmatprep.subr.bf16.mxu0 0
      %1954 = vmatpush1.bf16.msra.mxu0 0
      %1955 = vmatprep.subr.bf16.mxu0 0
      %1956 = vmatpush1.bf16.msra.mxu0 0
      %1957 = vmatprep.subr.bf16.mxu0 0
      %1958 = vmatpush1.bf16.msra.mxu0 0
      %1959 = vmatprep.subr.bf16.mxu0 0
      %1960 = vmatpush1.bf16.msra.mxu0 0
      %1961 = vmatprep.subr.bf16.mxu0 0
      %1962 = vmatpush1.bf16.msra.mxu0 0
      %1963 = vmatprep.subr.bf16.mxu0 0
      %1964 = vmatpush1.bf16.msra.mxu0 0
      %1965 = vmatprep.mubr.bf16.mxu0 0
      %1966 = vmatmul.mubr.bf16.gmra.mrb[0].mxu0 %v1922
      %v1967 = vpop.f32.mrb[0].mxu0
      %v1968 = vadd.f32 0.0, %v1967
      %v1969 = vpop.f32.mrb[0].mxu0
      %v1970 = vadd.f32 0.0, %v1969
      %v1971 = vpop.f32.mrb[0].mxu0
      %v1972 = vpop.f32.mrb[0].mxu0
      %1973 = vdwg.mxu0
      %1974 = vmatprep.subr.bf16.mxu0 0
      %1975 = vmatpush1.bf16.msra.mxu0 %v1931
      %1976 = vmatprep.subr.bf16.mxu0 0
      %1977 = vmatpush1.bf16.msra.mxu0 0
      %1978 = vmatprep.subr.bf16.mxu0 0
      %1979 = vmatpush1.bf16.msra.mxu0 0
      %1980 = vmatprep.subr.bf16.mxu0 0
      %1981 = vmatpush1.bf16.msra.mxu0 0
      %1982 = vmatprep.subr.bf16.mxu0 0
      %1983 = vmatpush1.bf16.msra.mxu0 0
      %1984 = vmatprep.subr.bf16.mxu0 0
      %1985 = vmatpush1.bf16.msra.mxu0 0
      %1986 = vmatprep.subr.bf16.mxu0 0
      %1987 = vmatpush1.bf16.msra.mxu0 0
      %1988 = vmatprep.subr.bf16.mxu0 0
      %1989 = vmatpush1.bf16.msra.mxu0 0
      %1990 = vmatprep.subr.bf16.mxu0 0
      %1991 = vmatpush1.bf16.msra.mxu0 0
      %1992 = vmatprep.subr.bf16.mxu0 0
      %1993 = vmatpush1.bf16.msra.mxu0 0
      %1994 = vmatprep.subr.bf16.mxu0 0
      %1995 = vmatpush1.bf16.msra.mxu0 0
      %1996 = vmatprep.subr.bf16.mxu0 0
      %1997 = vmatpush1.bf16.msra.mxu0 0
      %1998 = vmatprep.subr.bf16.mxu0 0
      %1999 = vmatpush1.bf16.msra.mxu0 0
      %2000 = vmatprep.subr.bf16.mxu0 0
      %2001 = vmatpush1.bf16.msra.mxu0 0
      %2002 = vmatprep.subr.bf16.mxu0 0
      %2003 = vmatpush1.bf16.msra.mxu0 0
      %2004 = vmatprep.subr.bf16.mxu0 0
      %2005 = vmatpush1.bf16.msra.mxu0 0
      %2006 = vmatprep.mubr.bf16.mxu0 0
      %2007 = vmatmul.mubr.bf16.gmra.mrb[0].mxu0 %v1922
      %v2008 = vpop.f32.mrb[0].mxu0
      %v2009 = vadd.f32 0.0, %v2008
      %v2010 = vpop.f32.mrb[0].mxu0
      %v2011 = vpop.f32.mrb[0].mxu0
      %v2012 = vpop.f32.mrb[0].mxu0
      %2013 = vdwg.mxu0
      %v2014 = vadd.f32 %v1890, %v1968
      %v2015 = vadd.f32 %v1891, %v1970
      %v2016 = vadd.f32 %v1892, %v2009
      %s2017 = scalar_lea.vmem %s2, 8
      %v2018 = vld [vmem:[%s2017] sm:$0x3]
      %v2019 = vld [vmem:[#allocation2] sm:$0x3f]
      %v2021 = vcombine.high %v2019, %v2019
      %v2023 = vunpack.c.l.s4 1983009808
      %v2024 = vunpack.c.0.s8 %v2023
      %v2025 = vlaneseq
      %v2026 = vshrl.u32 %v2025, 7
      %v2027 = vsub.s32 %v2024, %v2026
      %v2028 = vrot.slane %v2019, %v2027
      %v2030 = vunpack.c.l.s4 1983009808
      %v2031 = vunpack.c.0.s8 %v2030
      %v2032 = vlaneseq
      %v2033 = vshrl.u32 %v2032, 7
      %v2034 = vsub.s32 %v2031, %v2033
      %v2035 = vrot.slane %v2021, %v2034
      %v2036 = vcombine.high %v2028, %v2028
      %2037 = vrot.lane.b32.xlu0 %v2028, 109
      %v2038 = vpop.permute.xlu0 %2037
      %2039 = vrot.lane.b32.xlu0 %v2036, 109
      %v2040 = vpop.permute.xlu0 %2039
      %2041 = vrot.lane.b32.xlu0 %v2035, 109
      %v2042 = vpop.permute.xlu0 %2041
      %v2043 = vsel %vm804, %v2038, %v2040
      %v2044 = vsel %vm804, %v2040, %v2042
      %v2046 = vsel %vm340, %v2018, 0
      %v2049 = vsel %vm344, %v2043, 0
      %v2052 = vsel %vm344, %v2044, 0
      %v2055 = vsel %vm344, %v2042, 0
      %2057 = vmatprep.subr.bf16.mxu0 %v2052
      %2058 = vmatpush1.bf16.msra.mxu0 %v2049
      %2059 = vmatprep.subr.bf16.mxu0 0
      %2060 = vmatpush1.bf16.msra.mxu0 0
      %2061 = vmatprep.subr.bf16.mxu0 0
      %2062 = vmatpush1.bf16.msra.mxu0 0
      %2063 = vmatprep.subr.bf16.mxu0 0
      %2064 = vmatpush1.bf16.msra.mxu0 0
      %2065 = vmatprep.subr.bf16.mxu0 0
      %2066 = vmatpush1.bf16.msra.mxu0 0
      %2067 = vmatprep.subr.bf16.mxu0 0
      %2068 = vmatpush1.bf16.msra.mxu0 0
      %2069 = vmatprep.subr.bf16.mxu0 0
      %2070 = vmatpush1.bf16.msra.mxu0 0
      %2071 = vmatprep.subr.bf16.mxu0 0
      %2072 = vmatpush1.bf16.msra.mxu0 0
      %2073 = vmatprep.subr.bf16.mxu0 0
      %2074 = vmatpush1.bf16.msra.mxu0 0
      %2075 = vmatprep.subr.bf16.mxu0 0
      %2076 = vmatpush1.bf16.msra.mxu0 0
      %2077 = vmatprep.subr.bf16.mxu0 0
      %2078 = vmatpush1.bf16.msra.mxu0 0
      %2079 = vmatprep.subr.bf16.mxu0 0
      %2080 = vmatpush1.bf16.msra.mxu0 0
      %2081 = vmatprep.subr.bf16.mxu0 0
      %2082 = vmatpush1.bf16.msra.mxu0 0
      %2083 = vmatprep.subr.bf16.mxu0 0
      %2084 = vmatpush1.bf16.msra.mxu0 0
      %2085 = vmatprep.subr.bf16.mxu0 0
      %2086 = vmatpush1.bf16.msra.mxu0 0
      %2087 = vmatprep.subr.bf16.mxu0 0
      %2088 = vmatpush1.bf16.msra.mxu0 0
      %2089 = vmatprep.mubr.bf16.mxu0 0
      %2090 = vmatmul.mubr.bf16.gmra.mrb[0].mxu0 %v2046
      %v2091 = vpop.f32.mrb[0].mxu0
      %v2092 = vadd.f32 0.0, %v2091
      %v2093 = vpop.f32.mrb[0].mxu0
      %v2094 = vadd.f32 0.0, %v2093
      %v2095 = vpop.f32.mrb[0].mxu0
      %v2096 = vpop.f32.mrb[0].mxu0
      %2097 = vdwg.mxu0
      %2098 = vmatprep.subr.bf16.mxu0 0
      %2099 = vmatpush1.bf16.msra.mxu0 %v2055
      %2100 = vmatprep.subr.bf16.mxu0 0
      %2101 = vmatpush1.bf16.msra.mxu0 0
      %2102 = vmatprep.subr.bf16.mxu0 0
      %2103 = vmatpush1.bf16.msra.mxu0 0
      %2104 = vmatprep.subr.bf16.mxu0 0
      %2105 = vmatpush1.bf16.msra.mxu0 0
      %2106 = vmatprep.subr.bf16.mxu0 0
      %2107 = vmatpush1.bf16.msra.mxu0 0
      %2108 = vmatprep.subr.bf16.mxu0 0
      %2109 = vmatpush1.bf16.msra.mxu0 0
      %2110 = vmatprep.subr.bf16.mxu0 0
      %2111 = vmatpush1.bf16.msra.mxu0 0
      %2112 = vmatprep.subr.bf16.mxu0 0
      %2113 = vmatpush1.bf16.msra.mxu0 0
      %2114 = vmatprep.subr.bf16.mxu0 0
      %2115 = vmatpush1.bf16.msra.mxu0 0
      %2116 = vmatprep.subr.bf16.mxu0 0
      %2117 = vmatpush1.bf16.msra.mxu0 0
      %2118 = vmatprep.subr.bf16.mxu0 0
      %2119 = vmatpush1.bf16.msra.mxu0 0
      %2120 = vmatprep.subr.bf16.mxu0 0
      %2121 = vmatpush1.bf16.msra.mxu0 0
      %2122 = vmatprep.subr.bf16.mxu0 0
      %2123 = vmatpush1.bf16.msra.mxu0 0
      %2124 = vmatprep.subr.bf16.mxu0 0
      %2125 = vmatpush1.bf16.msra.mxu0 0
      %2126 = vmatprep.subr.bf16.mxu0 0
      %2127 = vmatpush1.bf16.msra.mxu0 0
      %2128 = vmatprep.subr.bf16.mxu0 0
      %2129 = vmatpush1.bf16.msra.mxu0 0
      %2130 = vmatprep.mubr.bf16.mxu0 0
      %2131 = vmatmul.mubr.bf16.gmra.mrb[0].mxu0 %v2046
      %v2132 = vpop.f32.mrb[0].mxu0
      %v2133 = vadd.f32 0.0, %v2132
      %v2134 = vpop.f32.mrb[0].mxu0
      %v2135 = vpop.f32.mrb[0].mxu0
      %v2136 = vpop.f32.mrb[0].mxu0
      %2137 = vdwg.mxu0
      %v2138 = vadd.f32 %v2014, %v2092
      %v2139 = vadd.f32 %v2015, %v2094
      %v2140 = vadd.f32 %v2016, %v2133
      %s2141 = scalar_lea.vmem %s2, 10
      %v2142 = vld [vmem:[%s2141] sm:$0x3]
      %v2143 = vld [vmem:[#allocation2] sm:$0x3f]
      %v2145 = vcombine.high %v2143, %v2143
      %v2147 = vunpack.c.l.s4 1983009808
      %v2148 = vunpack.c.0.s8 %v2147
      %v2149 = vlaneseq
      %v2150 = vshrl.u32 %v2149, 7
      %v2151 = vsub.s32 %v2148, %v2150
      %v2152 = vrot.slane %v2143, %v2151
      %v2154 = vunpack.c.l.s4 1983009808
      %v2155 = vunpack.c.0.s8 %v2154
      %v2156 = vlaneseq
      %v2157 = vshrl.u32 %v2156, 7
      %v2158 = vsub.s32 %v2155, %v2157
      %v2159 = vrot.slane %v2145, %v2158
      %v2160 = vcombine.high %v2152, %v2152
      %2161 = vrot.lane.b32.xlu0 %v2152, 108
      %v2162 = vpop.permute.xlu0 %2161
      %2163 = vrot.lane.b32.xlu0 %v2160, 108
      %v2164 = vpop.permute.xlu0 %2163
      %2165 = vrot.lane.b32.xlu0 %v2159, 108
      %v2166 = vpop.permute.xlu0 %2165
      %v2167 = vsel %vm929, %v2162, %v2164
      %v2168 = vsel %vm929, %v2164, %v2166
      %v2170 = vsel %vm340, %v2142, 0
      %v2173 = vsel %vm344, %v2167, 0
      %v2176 = vsel %vm344, %v2168, 0
      %v2179 = vsel %vm344, %v2166, 0
      %2181 = vmatprep.subr.bf16.mxu0 %v2176
      %2182 = vmatpush1.bf16.msra.mxu0 %v2173
      %2183 = vmatprep.subr.bf16.mxu0 0
      %2184 = vmatpush1.bf16.msra.mxu0 0
      %2185 = vmatprep.subr.bf16.mxu0 0
      %2186 = vmatpush1.bf16.msra.mxu0 0
      %2187 = vmatprep.subr.bf16.mxu0 0
      %2188 = vmatpush1.bf16.msra.mxu0 0
      %2189 = vmatprep.subr.bf16.mxu0 0
      %2190 = vmatpush1.bf16.msra.mxu0 0
      %2191 = vmatprep.subr.bf16.mxu0 0
      %2192 = vmatpush1.bf16.msra.mxu0 0
      %2193 = vmatprep.subr.bf16.mxu0 0
      %2194 = vmatpush1.bf16.msra.mxu0 0
      %2195 = vmatprep.subr.bf16.mxu0 0
      %2196 = vmatpush1.bf16.msra.mxu0 0
      %2197 = vmatprep.subr.bf16.mxu0 0
      %2198 = vmatpush1.bf16.msra.mxu0 0
      %2199 = vmatprep.subr.bf16.mxu0 0
      %2200 = vmatpush1.bf16.msra.mxu0 0
      %2201 = vmatprep.subr.bf16.mxu0 0
      %2202 = vmatpush1.bf16.msra.mxu0 0
      %2203 = vmatprep.subr.bf16.mxu0 0
      %2204 = vmatpush1.bf16.msra.mxu0 0
      %2205 = vmatprep.subr.bf16.mxu0 0
      %2206 = vmatpush1.bf16.msra.mxu0 0
      %2207 = vmatprep.subr.bf16.mxu0 0
      %2208 = vmatpush1.bf16.msra.mxu0 0
      %2209 = vmatprep.subr.bf16.mxu0 0
      %2210 = vmatpush1.bf16.msra.mxu0 0
      %2211 = vmatprep.subr.bf16.mxu0 0
      %2212 = vmatpush1.bf16.msra.mxu0 0
      %2213 = vmatprep.mubr.bf16.mxu0 0
      %2214 = vmatmul.mubr.bf16.gmra.mrb[0].mxu0 %v2170
      %v2215 = vpop.f32.mrb[0].mxu0
      %v2216 = vadd.f32 0.0, %v2215
      %v2217 = vpop.f32.mrb[0].mxu0
      %v2218 = vadd.f32 0.0, %v2217
      %v2219 = vpop.f32.mrb[0].mxu0
      %v2220 = vpop.f32.mrb[0].mxu0
      %2221 = vdwg.mxu0
      %2222 = vmatprep.subr.bf16.mxu0 0
      %2223 = vmatpush1.bf16.msra.mxu0 %v2179
      %2224 = vmatprep.subr.bf16.mxu0 0
      %2225 = vmatpush1.bf16.msra.mxu0 0
      %2226 = vmatprep.subr.bf16.mxu0 0
      %2227 = vmatpush1.bf16.msra.mxu0 0
      %2228 = vmatprep.subr.bf16.mxu0 0
      %2229 = vmatpush1.bf16.msra.mxu0 0
      %2230 = vmatprep.subr.bf16.mxu0 0
      %2231 = vmatpush1.bf16.msra.mxu0 0
      %2232 = vmatprep.subr.bf16.mxu0 0
      %2233 = vmatpush1.bf16.msra.mxu0 0
      %2234 = vmatprep.subr.bf16.mxu0 0
      %2235 = vmatpush1.bf16.msra.mxu0 0
      %2236 = vmatprep.subr.bf16.mxu0 0
      %2237 = vmatpush1.bf16.msra.mxu0 0
      %2238 = vmatprep.subr.bf16.mxu0 0
      %2239 = vmatpush1.bf16.msra.mxu0 0
      %2240 = vmatprep.subr.bf16.mxu0 0
      %2241 = vmatpush1.bf16.msra.mxu0 0
      %2242 = vmatprep.subr.bf16.mxu0 0
      %2243 = vmatpush1.bf16.msra.mxu0 0
      %2244 = vmatprep.subr.bf16.mxu0 0
      %2245 = vmatpush1.bf16.msra.mxu0 0
      %2246 = vmatprep.subr.bf16.mxu0 0
      %2247 = vmatpush1.bf16.msra.mxu0 0
      %2248 = vmatprep.subr.bf16.mxu0 0
      %2249 = vmatpush1.bf16.msra.mxu0 0
      %2250 = vmatprep.subr.bf16.mxu0 0
      %2251 = vmatpush1.bf16.msra.mxu0 0
      %2252 = vmatprep.subr.bf16.mxu0 0
      %2253 = vmatpush1.bf16.msra.mxu0 0
      %2254 = vmatprep.mubr.bf16.mxu0 0
      %2255 = vmatmul.mubr.bf16.gmra.mrb[0].mxu0 %v2170
      %v2256 = vpop.f32.mrb[0].mxu0
      %v2257 = vadd.f32 0.0, %v2256
      %v2258 = vpop.f32.mrb[0].mxu0
      %v2259 = vpop.f32.mrb[0].mxu0
      %v2260 = vpop.f32.mrb[0].mxu0
      %2261 = vdwg.mxu0
      %v2262 = vadd.f32 %v2138, %v2216
      %v2263 = vadd.f32 %v2139, %v2218
      %v2264 = vadd.f32 %v2140, %v2257
      %s2265 = scalar_lea.vmem %s2, 12
      %v2266 = vld [vmem:[%s2265] sm:$0x3]
      %v2267 = vld [vmem:[#allocation2] sm:$0x3f]
      %v2269 = vcombine.high %v2267, %v2267
      %v2271 = vunpack.c.l.s4 1983009808
      %v2272 = vunpack.c.0.s8 %v2271
      %v2273 = vlaneseq
      %v2274 = vshrl.u32 %v2273, 7
      %v2275 = vsub.s32 %v2272, %v2274
      %v2276 = vrot.slane %v2267, %v2275
      %v2278 = vunpack.c.l.s4 1983009808
      %v2279 = vunpack.c.0.s8 %v2278
      %v2280 = vlaneseq
      %v2281 = vshrl.u32 %v2280, 7
      %v2282 = vsub.s32 %v2279, %v2281
      %v2283 = vrot.slane %v2269, %v2282
      %v2284 = vcombine.high %v2276, %v2276
      %2285 = vrot.lane.b32.xlu0 %v2276, 92
      %v2286 = vpop.permute.xlu0 %2285
      %2287 = vrot.lane.b32.xlu0 %v2284, 92
      %v2288 = vpop.permute.xlu0 %2287
      %2289 = vrot.lane.b32.xlu0 %v2283, 92
      %v2290 = vpop.permute.xlu0 %2289
      %v2291 = vsel %vm1054, %v2286, %v2288
      %v2292 = vsel %vm1054, %v2288, %v2290
      %v2294 = vsel %vm340, %v2266, 0
      %v2297 = vsel %vm344, %v2291, 0
      %v2300 = vsel %vm344, %v2292, 0
      %v2303 = vsel %vm344, %v2290, 0
      %2305 = vmatprep.subr.bf16.mxu0 %v2300
      %2306 = vmatpush1.bf16.msra.mxu0 %v2297
      %2307 = vmatprep.subr.bf16.mxu0 0
      %2308 = vmatpush1.bf16.msra.mxu0 0
      %2309 = vmatprep.subr.bf16.mxu0 0
      %2310 = vmatpush1.bf16.msra.mxu0 0
      %2311 = vmatprep.subr.bf16.mxu0 0
      %2312 = vmatpush1.bf16.msra.mxu0 0
      %2313 = vmatprep.subr.bf16.mxu0 0
      %2314 = vmatpush1.bf16.msra.mxu0 0
      %2315 = vmatprep.subr.bf16.mxu0 0
      %2316 = vmatpush1.bf16.msra.mxu0 0
      %2317 = vmatprep.subr.bf16.mxu0 0
      %2318 = vmatpush1.bf16.msra.mxu0 0
      %2319 = vmatprep.subr.bf16.mxu0 0
      %2320 = vmatpush1.bf16.msra.mxu0 0
      %2321 = vmatprep.subr.bf16.mxu0 0
      %2322 = vmatpush1.bf16.msra.mxu0 0
      %2323 = vmatprep.subr.bf16.mxu0 0
      %2324 = vmatpush1.bf16.msra.mxu0 0
      %2325 = vmatprep.subr.bf16.mxu0 0
      %2326 = vmatpush1.bf16.msra.mxu0 0
      %2327 = vmatprep.subr.bf16.mxu0 0
      %2328 = vmatpush1.bf16.msra.mxu0 0
      %2329 = vmatprep.subr.bf16.mxu0 0
      %2330 = vmatpush1.bf16.msra.mxu0 0
      %2331 = vmatprep.subr.bf16.mxu0 0
      %2332 = vmatpush1.bf16.msra.mxu0 0
      %2333 = vmatprep.subr.bf16.mxu0 0
      %2334 = vmatpush1.bf16.msra.mxu0 0
      %2335 = vmatprep.subr.bf16.mxu0 0
      %2336 = vmatpush1.bf16.msra.mxu0 0
      %2337 = vmatprep.mubr.bf16.mxu0 0
      %2338 = vmatmul.mubr.bf16.gmra.mrb[0].mxu0 %v2294
      %v2339 = vpop.f32.mrb[0].mxu0
      %v2340 = vadd.f32 0.0, %v2339
      %v2341 = vpop.f32.mrb[0].mxu0
      %v2342 = vadd.f32 0.0, %v2341
      %v2343 = vpop.f32.mrb[0].mxu0
      %v2344 = vpop.f32.mrb[0].mxu0
      %2345 = vdwg.mxu0
      %2346 = vmatprep.subr.bf16.mxu0 0
      %2347 = vmatpush1.bf16.msra.mxu0 %v2303
      %2348 = vmatprep.subr.bf16.mxu0 0
      %2349 = vmatpush1.bf16.msra.mxu0 0
      %2350 = vmatprep.subr.bf16.mxu0 0
      %2351 = vmatpush1.bf16.msra.mxu0 0
      %2352 = vmatprep.subr.bf16.mxu0 0
      %2353 = vmatpush1.bf16.msra.mxu0 0
      %2354 = vmatprep.subr.bf16.mxu0 0
      %2355 = vmatpush1.bf16.msra.mxu0 0
      %2356 = vmatprep.subr.bf16.mxu0 0
      %2357 = vmatpush1.bf16.msra.mxu0 0
      %2358 = vmatprep.subr.bf16.mxu0 0
      %2359 = vmatpush1.bf16.msra.mxu0 0
      %2360 = vmatprep.subr.bf16.mxu0 0
      %2361 = vmatpush1.bf16.msra.mxu0 0
      %2362 = vmatprep.subr.bf16.mxu0 0
      %2363 = vmatpush1.bf16.msra.mxu0 0
      %2364 = vmatprep.subr.bf16.mxu0 0
      %2365 = vmatpush1.bf16.msra.mxu0 0
      %2366 = vmatprep.subr.bf16.mxu0 0
      %2367 = vmatpush1.bf16.msra.mxu0 0
      %2368 = vmatprep.subr.bf16.mxu0 0
      %2369 = vmatpush1.bf16.msra.mxu0 0
      %2370 = vmatprep.subr.bf16.mxu0 0
      %2371 = vmatpush1.bf16.msra.mxu0 0
      %2372 = vmatprep.subr.bf16.mxu0 0
      %2373 = vmatpush1.bf16.msra.mxu0 0
      %2374 = vmatprep.subr.bf16.mxu0 0
      %2375 = vmatpush1.bf16.msra.mxu0 0
      %2376 = vmatprep.subr.bf16.mxu0 0
      %2377 = vmatpush1.bf16.msra.mxu0 0
      %2378 = vmatprep.mubr.bf16.mxu0 0
      %2379 = vmatmul.mubr.bf16.gmra.mrb[0].mxu0 %v2294
      %v2380 = vpop.f32.mrb[0].mxu0
      %v2381 = vadd.f32 0.0, %v2380
      %v2382 = vpop.f32.mrb[0].mxu0
      %v2383 = vpop.f32.mrb[0].mxu0
      %v2384 = vpop.f32.mrb[0].mxu0
      %2385 = vdwg.mxu0
      %v2386 = vadd.f32 %v2262, %v2340
      %v2387 = vadd.f32 %v2263, %v2342
      %v2388 = vadd.f32 %v2264, %v2381
      %s2389 = scalar_lea.vmem %s2, 14
      %v2390 = vld [vmem:[%s2389] sm:$0x3]
      %v2391 = vld [vmem:[#allocation2] sm:$0x3f]
      %v2393 = vcombine.high %v2391, %v2391
      %v2395 = vunpack.c.l.s4 1983009808
      %v2396 = vunpack.c.0.s8 %v2395
      %v2397 = vlaneseq
      %v2398 = vshrl.u32 %v2397, 7
      %v2399 = vsub.s32 %v2396, %v2398
      %v2400 = vrot.slane %v2391, %v2399
      %v2402 = vunpack.c.l.s4 1983009808
      %v2403 = vunpack.c.0.s8 %v2402
      %v2404 = vlaneseq
      %v2405 = vshrl.u32 %v2404, 7
      %v2406 = vsub.s32 %v2403, %v2405
      %v2407 = vrot.slane %v2393, %v2406
      %v2408 = vcombine.high %v2400, %v2400
      %2409 = vrot.lane.b32.xlu0 %v2400, 91
      %v2410 = vpop.permute.xlu0 %2409
      %2411 = vrot.lane.b32.xlu0 %v2408, 91
      %v2412 = vpop.permute.xlu0 %2411
      %2413 = vrot.lane.b32.xlu0 %v2407, 91
      %v2414 = vpop.permute.xlu0 %2413
      %v2415 = vsel %vm1179, %v2410, %v2412
      %v2416 = vsel %vm1179, %v2412, %v2414
      %v2418 = vsel %vm340, %v2390, 0
      %v2421 = vsel %vm344, %v2415, 0
      %v2424 = vsel %vm344, %v2416, 0
      %v2427 = vsel %vm344, %v2414, 0
      %2429 = vmatprep.subr.bf16.mxu0 %v2424
      %2430 = vmatpush1.bf16.msra.mxu0 %v2421
      %2431 = vmatprep.subr.bf16.mxu0 0
      %2432 = vmatpush1.bf16.msra.mxu0 0
      %2433 = vmatprep.subr.bf16.mxu0 0
      %2434 = vmatpush1.bf16.msra.mxu0 0
      %2435 = vmatprep.subr.bf16.mxu0 0
      %2436 = vmatpush1.bf16.msra.mxu0 0
      %2437 = vmatprep.subr.bf16.mxu0 0
      %2438 = vmatpush1.bf16.msra.mxu0 0
      %2439 = vmatprep.subr.bf16.mxu0 0
      %2440 = vmatpush1.bf16.msra.mxu0 0
      %2441 = vmatprep.subr.bf16.mxu0 0
      %2442 = vmatpush1.bf16.msra.mxu0 0
      %2443 = vmatprep.subr.bf16.mxu0 0
      %2444 = vmatpush1.bf16.msra.mxu0 0
      %2445 = vmatprep.subr.bf16.mxu0 0
      %2446 = vmatpush1.bf16.msra.mxu0 0
      %2447 = vmatprep.subr.bf16.mxu0 0
      %2448 = vmatpush1.bf16.msra.mxu0 0
      %2449 = vmatprep.subr.bf16.mxu0 0
      %2450 = vmatpush1.bf16.msra.mxu0 0
      %2451 = vmatprep.subr.bf16.mxu0 0
      %2452 = vmatpush1.bf16.msra.mxu0 0
      %2453 = vmatprep.subr.bf16.mxu0 0
      %2454 = vmatpush1.bf16.msra.mxu0 0
      %2455 = vmatprep.subr.bf16.mxu0 0
      %2456 = vmatpush1.bf16.msra.mxu0 0
      %2457 = vmatprep.subr.bf16.mxu0 0
      %2458 = vmatpush1.bf16.msra.mxu0 0
      %2459 = vmatprep.subr.bf16.mxu0 0
      %2460 = vmatpush1.bf16.msra.mxu0 0
      %2461 = vmatprep.mubr.bf16.mxu0 0
      %2462 = vmatmul.mubr.bf16.gmra.mrb[0].mxu0 %v2418
      %v2463 = vpop.f32.mrb[0].mxu0
      %v2464 = vadd.f32 0.0, %v2463
      %v2465 = vpop.f32.mrb[0].mxu0
      %v2466 = vadd.f32 0.0, %v2465
      %v2467 = vpop.f32.mrb[0].mxu0
      %v2468 = vpop.f32.mrb[0].mxu0
      %2469 = vdwg.mxu0
      %2470 = vmatprep.subr.bf16.mxu0 0
      %2471 = vmatpush1.bf16.msra.mxu0 %v2427
      %2472 = vmatprep.subr.bf16.mxu0 0
      %2473 = vmatpush1.bf16.msra.mxu0 0
      %2474 = vmatprep.subr.bf16.mxu0 0
      %2475 = vmatpush1.bf16.msra.mxu0 0
      %2476 = vmatprep.subr.bf16.mxu0 0
      %2477 = vmatpush1.bf16.msra.mxu0 0
      %2478 = vmatprep.subr.bf16.mxu0 0
      %2479 = vmatpush1.bf16.msra.mxu0 0
      %2480 = vmatprep.subr.bf16.mxu0 0
      %2481 = vmatpush1.bf16.msra.mxu0 0
      %2482 = vmatprep.subr.bf16.mxu0 0
      %2483 = vmatpush1.bf16.msra.mxu0 0
      %2484 = vmatprep.subr.bf16.mxu0 0
      %2485 = vmatpush1.bf16.msra.mxu0 0
      %2486 = vmatprep.subr.bf16.mxu0 0
      %2487 = vmatpush1.bf16.msra.mxu0 0
      %2488 = vmatprep.subr.bf16.mxu0 0
      %2489 = vmatpush1.bf16.msra.mxu0 0
      %2490 = vmatprep.subr.bf16.mxu0 0
      %2491 = vmatpush1.bf16.msra.mxu0 0
      %2492 = vmatprep.subr.bf16.mxu0 0
      %2493 = vmatpush1.bf16.msra.mxu0 0
      %2494 = vmatprep.subr.bf16.mxu0 0
      %2495 = vmatpush1.bf16.msra.mxu0 0
      %2496 = vmatprep.subr.bf16.mxu0 0
      %2497 = vmatpush1.bf16.msra.mxu0 0
      %2498 = vmatprep.subr.bf16.mxu0 0
      %2499 = vmatpush1.bf16.msra.mxu0 0
      %2500 = vmatprep.subr.bf16.mxu0 0
      %2501 = vmatpush1.bf16.msra.mxu0 0
      %2502 = vmatprep.mubr.bf16.mxu0 0
      %2503 = vmatmul.mubr.bf16.gmra.mrb[0].mxu0 %v2418
      %v2504 = vpop.f32.mrb[0].mxu0
      %v2505 = vadd.f32 0.0, %v2504
      %v2506 = vpop.f32.mrb[0].mxu0
      %v2507 = vpop.f32.mrb[0].mxu0
      %v2508 = vpop.f32.mrb[0].mxu0
      %2509 = vdwg.mxu0
      %v2510 = vadd.f32 %v2386, %v2464
      %v2511 = vadd.f32 %v2387, %v2466
      %v2512 = vadd.f32 %v2388, %v2505
      %s2513 = scalar_lea.vmem %s2, 16
      %v2514 = vld [vmem:[%s2513] sm:$0x3]
      %v2515 = vld [vmem:[#allocation2] sm:$0x3f]
      %v2517 = vcombine.high %v2515, %v2515
      %v2519 = vunpack.c.l.s4 1983009808
      %v2520 = vunpack.c.0.s8 %v2519
      %v2521 = vlaneseq
      %v2522 = vshrl.u32 %v2521, 7
      %v2523 = vsub.s32 %v2520, %v2522
      %v2524 = vrot.slane %v2515, %v2523
      %v2526 = vunpack.c.l.s4 1983009808
      %v2527 = vunpack.c.0.s8 %v2526
      %v2528 = vlaneseq
      %v2529 = vshrl.u32 %v2528, 7
      %v2530 = vsub.s32 %v2527, %v2529
      %v2531 = vrot.slane %v2517, %v2530
      %v2532 = vcombine.high %v2524, %v2524
      %2533 = vrot.lane.b32.xlu0 %v2524, 90
      %v2534 = vpop.permute.xlu0 %2533
      %2535 = vrot.lane.b32.xlu0 %v2532, 90
      %v2536 = vpop.permute.xlu0 %2535
      %2537 = vrot.lane.b32.xlu0 %v2531, 90
      %v2538 = vpop.permute.xlu0 %2537
      %v2539 = vsel %vm1304, %v2534, %v2536
      %v2540 = vsel %vm1304, %v2536, %v2538
      %v2542 = vsel %vm340, %v2514, 0
      %v2545 = vsel %vm344, %v2539, 0
      %v2548 = vsel %vm344, %v2540, 0
      %v2551 = vsel %vm344, %v2538, 0
      %2553 = vmatprep.subr.bf16.mxu0 %v2548
      %2554 = vmatpush1.bf16.msra.mxu0 %v2545
      %2555 = vmatprep.subr.bf16.mxu0 0
      %2556 = vmatpush1.bf16.msra.mxu0 0
      %2557 = vmatprep.subr.bf16.mxu0 0
      %2558 = vmatpush1.bf16.msra.mxu0 0
      %2559 = vmatprep.subr.bf16.mxu0 0
      %2560 = vmatpush1.bf16.msra.mxu0 0
      %2561 = vmatprep.subr.bf16.mxu0 0
      %2562 = vmatpush1.bf16.msra.mxu0 0
      %2563 = vmatprep.subr.bf16.mxu0 0
      %2564 = vmatpush1.bf16.msra.mxu0 0
      %2565 = vmatprep.subr.bf16.mxu0 0
      %2566 = vmatpush1.bf16.msra.mxu0 0
      %2567 = vmatprep.subr.bf16.mxu0 0
      %2568 = vmatpush1.bf16.msra.mxu0 0
      %2569 = vmatprep.subr.bf16.mxu0 0
      %2570 = vmatpush1.bf16.msra.mxu0 0
      %2571 = vmatprep.subr.bf16.mxu0 0
      %2572 = vmatpush1.bf16.msra.mxu0 0
      %2573 = vmatprep.subr.bf16.mxu0 0
      %2574 = vmatpush1.bf16.msra.mxu0 0
      %2575 = vmatprep.subr.bf16.mxu0 0
      %2576 = vmatpush1.bf16.msra.mxu0 0
      %2577 = vmatprep.subr.bf16.mxu0 0
      %2578 = vmatpush1.bf16.msra.mxu0 0
      %2579 = vmatprep.subr.bf16.mxu0 0
      %2580 = vmatpush1.bf16.msra.mxu0 0
      %2581 = vmatprep.subr.bf16.mxu0 0
      %2582 = vmatpush1.bf16.msra.mxu0 0
      %2583 = vmatprep.subr.bf16.mxu0 0
      %2584 = vmatpush1.bf16.msra.mxu0 0
      %2585 = vmatprep.mubr.bf16.mxu0 0
      %2586 = vmatmul.mubr.bf16.gmra.mrb[0].mxu0 %v2542
      %v2587 = vpop.f32.mrb[0].mxu0
      %v2588 = vadd.f32 0.0, %v2587
      %v2589 = vpop.f32.mrb[0].mxu0
      %v2590 = vadd.f32 0.0, %v2589
      %v2591 = vpop.f32.mrb[0].mxu0
      %v2592 = vpop.f32.mrb[0].mxu0
      %2593 = vdwg.mxu0
      %2594 = vmatprep.subr.bf16.mxu0 0
      %2595 = vmatpush1.bf16.msra.mxu0 %v2551
      %2596 = vmatprep.subr.bf16.mxu0 0
      %2597 = vmatpush1.bf16.msra.mxu0 0
      %2598 = vmatprep.subr.bf16.mxu0 0
      %2599 = vmatpush1.bf16.msra.mxu0 0
      %2600 = vmatprep.subr.bf16.mxu0 0
      %2601 = vmatpush1.bf16.msra.mxu0 0
      %2602 = vmatprep.subr.bf16.mxu0 0
      %2603 = vmatpush1.bf16.msra.mxu0 0
      %2604 = vmatprep.subr.bf16.mxu0 0
      %2605 = vmatpush1.bf16.msra.mxu0 0
      %2606 = vmatprep.subr.bf16.mxu0 0
      %2607 = vmatpush1.bf16.msra.mxu0 0
      %2608 = vmatprep.subr.bf16.mxu0 0
      %2609 = vmatpush1.bf16.msra.mxu0 0
      %2610 = vmatprep.subr.bf16.mxu0 0
      %2611 = vmatpush1.bf16.msra.mxu0 0
      %2612 = vmatprep.subr.bf16.mxu0 0
      %2613 = vmatpush1.bf16.msra.mxu0 0
      %2614 = vmatprep.subr.bf16.mxu0 0
      %2615 = vmatpush1.bf16.msra.mxu0 0
      %2616 = vmatprep.subr.bf16.mxu0 0
      %2617 = vmatpush1.bf16.msra.mxu0 0
      %2618 = vmatprep.subr.bf16.mxu0 0
      %2619 = vmatpush1.bf16.msra.mxu0 0
      %2620 = vmatprep.subr.bf16.mxu0 0
      %2621 = vmatpush1.bf16.msra.mxu0 0
      %2622 = vmatprep.subr.bf16.mxu0 0
      %2623 = vmatpush1.bf16.msra.mxu0 0
      %2624 = vmatprep.subr.bf16.mxu0 0
      %2625 = vmatpush1.bf16.msra.mxu0 0
      %2626 = vmatprep.mubr.bf16.mxu0 0
      %2627 = vmatmul.mubr.bf16.gmra.mrb[0].mxu0 %v2542
      %v2628 = vpop.f32.mrb[0].mxu0
      %v2629 = vadd.f32 0.0, %v2628
      %v2630 = vpop.f32.mrb[0].mxu0
      %v2631 = vpop.f32.mrb[0].mxu0
      %v2632 = vpop.f32.mrb[0].mxu0
      %2633 = vdwg.mxu0
      %v2634 = vadd.f32 %v2510, %v2588
      %v2635 = vadd.f32 %v2511, %v2590
      %v2636 = vadd.f32 %v2512, %v2629
      %v2637 = vsel %vm1406, %v2634, 0.0
      %v2638 = vsel %vm1407, %v2635, 0.0
      %v2639 = vsel %vm1408, %v2636, 0.0
      %v2640 = vsel %vm1412, %v2637, 0.0
      %v2641 = vsel %vm1412, %v2638, 0.0
      %v2642 = vadd.f32 %v2640, %v2641
      %v2643 = vsel %vm1416, %v2639, 0.0
      %v2644 = vadd.f32 %v2642, %v2643
      %2645 = vadd.xlane.f32.xlu0 %v2644
      %v2646 = vpop.xlane.xlu0 %2645
      %v2647 = vmul.f32 %v2646, 0.00390625
      %v2648 = vmul.f32 %v2637, %v2637
      %v2649 = vmul.f32 %v2638, %v2638
      %v2650 = vmul.f32 %v2639, %v2639
      %v2651 = vsel %vm1412, %v2648, 0.0
      %v2652 = vsel %vm1412, %v2649, 0.0
      %v2653 = vadd.f32 %v2651, %v2652
      %v2654 = vsel %vm1416, %v2650, 0.0
      %v2655 = vadd.f32 %v2653, %v2654
      %2656 = vadd.xlane.f32.xlu0 %v2655
      %v2657 = vpop.xlane.xlu0 %2656
      %v2658 = vmul.f32 %v2657, 0.00390625
      %v2659 = vmul.f32 %v2647, %v2647
      %v2660 = vsub.f32 %v2658, %v2659
      %v2661 = vmax.f32 %v2660, 0.0
      %v2662 = vsub.f32 %v2634, %v2647
      %v2663 = vsub.f32 %v2635, %v2647
      %v2664 = vsub.f32 %v2636, %v2647
      %v2665 = vadd.f32 %v2661, 1e-05
      %v2666 = vrsqrt.pop %v2665
      %v2667 = vmul.f32 %v2662, %v2666
      %v2668 = vmul.f32 %v2663, %v2666
      %v2669 = vmul.f32 %v2664, %v2666
      %v2672 = vcombine.low %v2667, %v2668
      %v2674 = vadd.f32 %v243, %v2672
      %v2675 = vadd.f32 %v244, %v2669
      %2676 = vst [vmem:[%s170] sm:$0xff] %v2674
      %2677 = vst.msk [vmem:[%s170 + $0x8] sm:$0xf] %vm1416, %v2675
      %p2678 = scmp.lt.s32.totalorder %s14, 1
      %s2679 = scalar_select %p2678, %s14, 1
      %s2680 = smul.addr %s2679, 3
      %s2681 = smul.addr %s2680, 4
      %s2682 = scalar_lea.vmem %s3, %s2681
      // Predicated region
      $region33: #{residual_block.1} parent=31 // pred_check
        %p2683 = pneg %p100
      $region34: #{residual_block.1} parent=31 // pred_check_branch
        %2685 = sbr.rel (%p2683) target = $region36
      $region35: #{residual_block.1} parent=31 // pred_region
        _
      $region36: #{residual_block.1} parent=31 // pred_fallthru
        _
    $region32: #{residual_block.1} parent=5 // pred_fallthru
      _
    %p2686 = scmp.le.s32.totalorder 2, %s9
    // Predicated region
    $region37: #{residual_block.1} parent=5 // pred_check
      %p2687 = pneg %p2686
    $region38: #{residual_block.1} parent=5 // pred_check_branch
      %2689 = sbr.rel (%p2687) target = $region40
    $region39: #{residual_block.1} parent=5 // pred_region
      %s2690 = ssub.s32 %s9, 2
      // Predicated region
      $region41: #{residual_block.1} parent=39 // pred_check
        %p2691 = pneg %p106
      $region42: #{residual_block.1} parent=39 // pred_check_branch
        %2693 = sbr.rel (%p2691) target = $region44
      $region43: #{residual_block.1} parent=39 // pred_region
        %p2694 = scmp.lt.s32.totalorder %s15, 1
        %s2695 = scalar_select %p2694, %s15, 1
        %s2696 = smul.addr %s2695, 3
        %s2697 = smul.addr %s2696, 4
        %s2698 = scalar_lea.vmem %s3, %s2697
      $region44: #{residual_block.1} parent=39 // pred_fallthru
        _
    $region40: #{residual_block.1} parent=5 // pred_fallthru
      _
  $region6: #{residual_block.1} parent=0 // loop_footer
    %s13 = sadd.s32 1, %s9
  $region7: #{residual_block.1} parent=0 // loop_footer_branch
    %8 = sbr.rel target = $region3
  $region8: #{residual_block.1} parent=0 // loop_exit
    _

</llo_original>
